<compile_context>
chip_gen: v6e
topology: v6e:2x2x1
jax: 0.10.0
libtpu: 0.0.40
codegen_flags: <defaults>
</compile_context>

<pallas_src>
import math

import jax
import jax.numpy as jnp
from jax.experimental import pallas as pl
from jax.experimental.pallas import tpu as pltpu


_LANE = 128
_MIN_LANE_WIDTH = 512          # aim for >= 512 lanes per output row
_TARGET_BLOCK_BYTES = 8 << 20  # ~8 MiB output block per grid step (review, v7x)

# Even Taylor coefficients of cos(pi*d) for d in [-1/2, 1/2]:
#   cos(pi*d) ~= c0 + c1 d^2 + c2 d^4 + c3 d^6 + c4 d^8 + c5 d^10
# Truncation error at |d| = 1/2 is (pi/2)^12 / 12! < 5e-7  (tolerance 2e-3).
_COS_PI_COEFFS = (
    1.0,
    -4.934802200544679,     # -pi^2 / 2!
    4.058712126416768,      #  pi^4 / 4!
    -1.3352627688545893,    # -pi^6 / 6!
    0.23533063035889327,    #  pi^8 / 8!
    -0.025806891390014057,  # -pi^10 / 10!
)


def _cos_pi(u):
    """cos(pi * u) in f32 for any |u| < 2^22 (~20 VALU ops/element).

    Reduction: n = round(u), d = u - n (exact in f32), cos(pi*u) =
    (-1)^n * cos(pi*d), with cos(pi*d) from an even polynomial in d^2.
    """
    n = jnp.floor(u + 0.5)            # nearest integer (half-up; ties harmless)
    d = u - n                         # exact; |d| <= 0.5
    d2 = d * d
    p = jnp.float32(_COS_PI_COEFFS[-1])
    for c in _COS_PI_COEFFS[-2::-1]:
        p = p * d2 + jnp.float32(c)
    odd = jnp.bitwise_and(n.astype(jnp.int32), 1)
    return jnp.where(odd == 0, p, -p)


def _cape2d_kernel(w_ref, xy1_ref, o_ref):
    # w_ref   : (2k+1, L) fused [Wx ; Wy ; sin_bias] expansion matrix (resident)
    # xy1_ref : (rows_blk, 2k+1) packed [x | y | 1] rows (k positions per row)
    # o_ref   : (rows_blk, L) lane-dense channel-minor output, L = k*d_model
    #
    # One small-K MXU matmul does lane expansion + frequency scaling + the
    # -1/2 sin offset; it outputs the phase in units of pi.  HIGHEST precision
    # is required for f32 fidelity (Mosaic supports DEFAULT/HIGHEST only);
    # the extra passes stay hidden under the VALU-bound cosine below.
    u = jnp.dot(
        xy1_ref[...], w_ref[...],
        preferred_element_type=jnp.float32,
        precision=jax.lax.Precision.HIGHEST,
    )
    o_ref[...] = _cos_pi(u).astype(o_ref.dtype)


def cape2d_forward(x, y, w_x, w_y, *, out_dtype=None, block_rows=None):
    """x, y: (B, H, W) relative positions in [-1, 1]. Returns (B, H, W, d_model).

    out_dtype: pass jnp.bfloat16 to halve HBM write traffic (recommended on
    v5e/v6e where the kernel is write-bound after the custom cos) if the
    consumer tolerates bf16; defaults to the input dtype.
    """
    assert x.shape == y.shape
    orig_shape = x.shape
    if out_dtype is None:
        out_dtype = x.dtype
    out_itemsize = jnp.dtype(out_dtype).itemsize
    half = w_x.shape[0]
    d_model = 2 * half
    P = math.prod(orig_shape)
    cdiv = lambda a, b: -(-a // b)

    # --- lane geometry: pack k positions per lane-row so L = k*d_model is a
    # (large) multiple of 128 -> unmasked, full-width stores.
    k = _LANE // math.gcd(d_model, _LANE)
    L = k * d_model
    while L < _MIN_LANE_WIDTH:
        k *= 2
        L *= 2
    K = 2 * k + 1                       # [x-slots | y-slots | ones]

    # --- row blocking: big blocks amortize the per-step pipeline overhead,
    # but keep >= 2 grid steps so "parallel" can shard v7x's two TensorCores.
    row_align = max(8, 32 // out_itemsize)     # f32 -> 8, bf16 -> 16
    n_rows = cdiv(P, k)
    if block_rows is None:
        block_rows = max(row_align,
                         (_TARGET_BLOCK_BYTES // (out_itemsize * L))
                         // row_align * row_align)
    half_rows = max(row_align, cdiv(cdiv(n_rows, 2), row_align) * row_align)
    rows_blk = max(row_align, min(block_rows, half_rows) // row_align * row_align)
    n_blocks = cdiv(n_rows, rows_blk)
    rows_pad = n_blocks * rows_blk
    P_pad = rows_pad * k

    # --- pack [x | y | 1] rows (zero-pad the flattened tail).
    xf = x.reshape(-1).astype(jnp.float32)
    yf = y.reshape(-1).astype(jnp.float32)
    if P_pad != P:
        xf = jnp.pad(xf, (0, P_pad - P))
        yf = jnp.pad(yf, (0, P_pad - P))
    xy1 = jnp.concatenate(
        [xf.reshape(rows_pad, k), yf.reshape(rows_pad, k),
         jnp.ones((rows_pad, 1), jnp.float32)], axis=-1)        # (rows_pad, K)

    # --- fused weight matrix: block-diagonal per-position expansion of the
    # frequencies (NO pi prescale: kernel evaluates cos(pi*u)), plus the -1/2
    # bias column that turns the second half of each channel group into sin.
    w_x = w_x.astype(jnp.float32)
    w_y = w_y.astype(jnp.float32)
    cx = jnp.tile(w_x, 2)                                       # (d_model,)
    cy = jnp.tile(w_y, 2)
    eye_k = jnp.eye(k, dtype=jnp.float32)
    wx_big = jnp.kron(eye_k, cx[None, :])                       # (k, L)
    wy_big = jnp.kron(eye_k, cy[None, :])                       # (k, L)
    sin_bias = jnp.concatenate(
        [jnp.zeros((half,), jnp.float32), jnp.full((half,), -0.5, jnp.float32)])
    bias_big = jnp.tile(sin_bias, k)[None, :]                   # (1, L)
    w_full = jnp.concatenate([wx_big, wy_big, bias_big], axis=0)  # (K, L)

    # --- VMEM budget: double-buffered streamed blocks + resident weights,
    # capped at half of this generation's physical VMEM (review: derive from HW).
    lhs_block = 4 * rows_blk * K
    out_block = out_itemsize * rows_blk * L
    resident = 4 * K * L
    need = 2 * (lhs_block + out_block) + 2 * resident
    try:
        vmem_cap = int(pltpu.get_tpu_info().vmem_capacity_bytes)
    except Exception:
        vmem_cap = 64 << 20                 # smallest per-core VMEM (v7x)
    vmem_limit = int(min(need + (6 << 20), max(vmem_cap // 2, 32 << 20)))

    out = pl.pallas_call(
        _cape2d_kernel,
        out_shape=jax.ShapeDtypeStruct((rows_pad, L), out_dtype),
        grid=(n_blocks,),
        in_specs=[
            pl.BlockSpec((K, L), lambda i: (0, 0)),            # fused weights (resident)
            pl.BlockSpec((rows_blk, K), lambda i: (i, 0)),     # [x | y | 1] rows
        ],
        out_specs=pl.BlockSpec((rows_blk, L), lambda i: (i, 0)),
        compiler_params=pltpu.CompilerParams(
            dimension_semantics=("parallel",),
            vmem_limit_bytes=vmem_limit,
        ),
    )(w_full, xy1)

    # (rows_pad, L) row-major is exactly (P_pad, d_model) channel-minor -> free reshape.
    out = out.reshape(P_pad, d_model)
    if P_pad != P:
        out = out[:P]
    return out.reshape(*orig_shape, d_model)


def make_cape2d_buffers(d_model):
    """Deterministic buffers, exactly as in CAPE2d.__init__."""
    assert d_model % 2 == 0
    half = d_model // 2
    rho = 10.0 ** jnp.linspace(0.0, 1.0, half, dtype=jnp.float32)
    idx = jnp.arange(half, dtype=jnp.float32)
    w_x = rho * jnp.cos(idx)
    w_y = rho * jnp.sin(idx)
    return w_x, w_y


def cape2d_reference(x, y, w_x, w_y):
    """Pure-JAX reference matching the PyTorch forward (eval mode)."""
    phase = jnp.pi * (w_x * x[..., None] + w_y * y[..., None])
    return jnp.concatenate([jnp.cos(phase), jnp.sin(phase)], axis=-1)


if __name__ == "__main__":
    key = jax.random.PRNGKey(0)
    k0, k1, k2, k3 = jax.random.split(key, 4)

    # Validate the custom cos(pi*u) over the module's full phase range
    # (|phase| <= pi*10*sqrt(2) + pi/2  ->  |u| <= ~15).
    u_test = jnp.linspace(-15.5, 15.5, 4097, dtype=jnp.float32)
    cos_err = jnp.max(jnp.abs(_cos_pi(u_test) - jnp.cos(jnp.pi * u_test)))
    assert float(cos_err) < 1e-5, float(cos_err)

    # Case 1: (B, H, W) = (2, 16, 16), d_model = 32
    B, H, W, d_model = 2, 16, 16, 32
    x = jax.random.uniform(k0, (B, H, W), jnp.float32, minval=-1.0, maxval=1.0)
    y = jax.random.uniform(k1, (B, H, W), jnp.float32, minval=-1.0, maxval=1.0)
    w_x, w_y = make_cape2d_buffers(d_model)
    out = jax.block_until_ready(cape2d_forward(x, y, w_x, w_y))
    ref = cape2d_reference(x, y, w_x, w_y)
    assert out.shape == (B, H, W, d_model), out.shape
    assert jnp.allclose(out, ref, atol=2e-3, rtol=2e-3), "case 1 mismatch vs reference"

    # Case 2: ViT-style 14x14 grid (positions not a multiple of the tile) -> padding path
    B2, H2, W2, d2 = 1, 14, 14, 64
    x2 = jax.random.uniform(k2, (B2, H2, W2), jnp.float32, minval=-1.0, maxval=1.0)
    y2 = jax.random.uniform(k3, (B2, H2, W2), jnp.float32, minval=-1.0, maxval=1.0)
    w_x2, w_y2 = make_cape2d_buffers(d2)
    out2 = jax.block_until_ready(cape2d_forward(x2, y2, w_x2, w_y2))
    ref2 = cape2d_reference(x2, y2, w_x2, w_y2)
    assert out2.shape == (B2, H2, W2, d2), out2.shape
    assert jnp.allclose(out2, ref2, atol=2e-3, rtol=2e-3), "case 2 mismatch vs reference"

    # Case 3: bf16 output (recommended path on v5e/v6e once write-bound).
    out_b = jax.block_until_ready(
        cape2d_forward(x, y, w_x, w_y, out_dtype=jnp.bfloat16))
    assert out_b.dtype == jnp.bfloat16
    assert jnp.allclose(out_b.astype(jnp.float32), ref, atol=8e-3, rtol=1e-2), \
        "case 3 (bf16) mismatch vs reference"

    print("KERNEL_OK")
</pallas_src>

<mosaic_0001>
module attributes {stable_mosaic.version = 11 : i64} {
  func.func @_cape2d_kernel(%arg0: i32, %arg1: memref<33x512xf32, #tpu.memory_space<vmem>>, %arg2: memref<16x33xf32, #tpu.memory_space<vmem>>, %arg3: memref<16x512xf32, #tpu.memory_space<vmem>>) attributes {dimension_semantics = [#tpu.dimension_semantics<parallel>], iteration_bounds = array<i64: 2>, scalar_prefetch = 0 : i64, scratch_operands = 0 : i64, tpu.core_type = #tpu.core_type<tc>, window_params = [{pipeline_mode = #tpu.pipeline_mode<synchronous>, transform_indices = @transform_0, window_bounds = array<i64: 33, 512>}, {transform_indices = @transform_1, window_bounds = array<i64: 16, 33>}, {transform_indices = @transform_2, window_bounds = array<i64: 16, 512>}]} {
    %c0 = arith.constant 0 : index
    %c0_0 = arith.constant 0 : index
    %0 = vector.load %arg2[%c0, %c0_0] : memref<16x33xf32, #tpu.memory_space<vmem>>, vector<16x33xf32>
    %c0_1 = arith.constant 0 : index
    %c0_2 = arith.constant 0 : index
    %1 = vector.load %arg1[%c0_1, %c0_2] : memref<33x512xf32, #tpu.memory_space<vmem>>, vector<33x512xf32>
    %cst = arith.constant dense<0.000000e+00> : vector<16x512xf32>
    %2 = tpu.matmul %0, %1, %cst {dimension_numbers = #tpu.dot_dimension_numbers<[1], [0], [0], [1], [0, 0, 1, 1], [], []>, precision = #tpu.contract_precision<fp32>} : vector<16x33xf32>, vector<33x512xf32>, vector<16x512xf32> -> vector<16x512xf32>
    %cst_3 = arith.constant 5.000000e-01 : f32
    %3 = vector.broadcast %cst_3 : f32 to vector<16x512xf32>
    %4 = arith.addf %2, %3 : vector<16x512xf32>
    %5 = math.floor %4 : vector<16x512xf32>
    %6 = arith.subf %2, %5 : vector<16x512xf32>
    %7 = arith.mulf %6, %6 : vector<16x512xf32>
    %cst_4 = arith.constant -0.0258068908 : f32
    %8 = vector.broadcast %cst_4 : f32 to vector<16x512xf32>
    %9 = arith.mulf %8, %7 : vector<16x512xf32>
    %cst_5 = arith.constant 0.235330626 : f32
    %10 = vector.broadcast %cst_5 : f32 to vector<16x512xf32>
    %11 = arith.addf %9, %10 : vector<16x512xf32>
    %12 = arith.mulf %11, %7 : vector<16x512xf32>
    %cst_6 = arith.constant -1.33526278 : f32
    %13 = vector.broadcast %cst_6 : f32 to vector<16x512xf32>
    %14 = arith.addf %12, %13 : vector<16x512xf32>
    %15 = arith.mulf %14, %7 : vector<16x512xf32>
    %cst_7 = arith.constant 4.05871201 : f32
    %16 = vector.broadcast %cst_7 : f32 to vector<16x512xf32>
    %17 = arith.addf %15, %16 : vector<16x512xf32>
    %18 = arith.mulf %17, %7 : vector<16x512xf32>
    %cst_8 = arith.constant -4.93480206 : f32
    %19 = vector.broadcast %cst_8 : f32 to vector<16x512xf32>
    %20 = arith.addf %18, %19 : vector<16x512xf32>
    %21 = arith.mulf %20, %7 : vector<16x512xf32>
    %cst_9 = arith.constant 1.000000e+00 : f32
    %22 = vector.broadcast %cst_9 : f32 to vector<16x512xf32>
    %23 = arith.addf %21, %22 : vector<16x512xf32>
    %24 = arith.fptosi %5 : vector<16x512xf32> to vector<16x512xi32>
    %c1_i32 = arith.constant 1 : i32
    %25 = vector.broadcast %c1_i32 : i32 to vector<16x512xi32>
    %26 = arith.andi %24, %25 : vector<16x512xi32>
    %c0_i32 = arith.constant 0 : i32
    %27 = vector.broadcast %c0_i32 : i32 to vector<16x512xi32>
    %28 = arith.cmpi eq, %26, %27 : vector<16x512xi32>
    %cst_10 = arith.constant 0.000000e+00 : f32
    %29 = vector.broadcast %cst_10 : f32 to vector<16x512xf32>
    %30 = arith.subf %29, %23 : vector<16x512xf32>
    %31 = arith.select %28, %23, %30 : vector<16x512xi1>, vector<16x512xf32>
    %c0_11 = arith.constant 0 : index
    %c0_12 = arith.constant 0 : index
    %32 = vector.load %arg3[%c0_11, %c0_12] : memref<16x512xf32, #tpu.memory_space<vmem>>, vector<16x512xf32>
    tpu.vector_store %arg3[%c0_11, %c0_12], %31 {strides = array<i32>} : memref<16x512xf32, #tpu.memory_space<vmem>>, vector<16x512xf32>,
    return
  }
  func.func @transform_0(%arg0: i32) -> (i32, i32) {
    %c0_i32 = arith.constant 0 : i32
    %c0_i32_0 = arith.constant 0 : i32
    %c0_i32_1 = arith.constant 0 : i32
    return %c0_i32, %c0_i32_0 : i32, i32
  }
  func.func @transform_1(%arg0: i32) -> (i32, i32) {
    %c0_i32 = arith.constant 0 : i32
    %c0_i32_0 = arith.constant 0 : i32
    return %arg0, %c0_i32 : i32, i32
  }
  func.func @transform_2(%arg0: i32) -> (i32, i32) {
    %c0_i32 = arith.constant 0 : i32
    %c0_i32_0 = arith.constant 0 : i32
    return %arg0, %c0_i32 : i32, i32
  }
}

</mosaic_0001>

<llo_original>
// kernel: tpu_custom_call.1
$region0: #{tpu_custom_call.1}
  #allocation0 [shape = 'u32[]', space=smem, size = 0x4, offset = 0x4, fixed_abs, tag = 'smem constant byte address 0x4 - core index']
  #allocation1 [shape = 'u32[144,128]{1,0:T(1,128)}', space=vmem, size = 0x12000, scoped, tag = 'internal scratch']
  %s0 = inlined_call_operand.hbm [shape: f32[33,512], index: 0, kind: input, shape index: {}]
  %s1 = inlined_call_operand.hbm [shape: f32[32,33], index: 1, kind: input, shape index: {}]
  %s2 = inlined_call_operand.hbm [shape: f32[32,512], index: 2, kind: output, shape index: {}]
  %s3 = sld [smem:[#allocation0]]
  $region49: #{tpu_custom_call.1} parent=0
    _
  %s5 = ssub.s32 1, %s3
  %s6 = scalar_select 0, %s5, %s3
  $region1: #{tpu_custom_call.1} parent=0
    #allocation2 [shape = 'u8[81920]{0}', space=vmem, size = 0x14000, scoped, tag = 'input window, operand 0, single buffered']
    #allocation3 [shape = 's32[2]{0}', space=sflag, size = 0x8, scoped, tag = 'scoped memory for tpu_custom_call.1']
    #allocation4 [shape = 's32[2]{0}', space=sflag, size = 0x8, scoped, tag = 'scoped memory for tpu_custom_call.1']
    #allocation5 [shape = 'u8[16384]{0}', space=vmem, size = 0x4000, scoped, tag = 'input window, operand 1']
    #allocation6 [shape = 's32[2]{0}', space=sflag, size = 0x8, scoped, tag = 'scoped memory for tpu_custom_call.1']
    #allocation7 [shape = 'u8[65536]{0}', space=vmem, size = 0x10000, scoped, tag = 'output window, operand 0']
    %7 = vsyncpa [#allocation3], 0
    %8 = vsyncpa [#allocation6], 0
    %s9 = scalar_lea.sflag [#allocation6], 1
    %10 = vsyncpa %s9, 0
    %11 = vsyncpa [#allocation4], 0
    %s12 = scalar_lea.sflag [#allocation4], 1
    %13 = vsyncpa %s12, 0
    loop: start=0, step=1, limit=4
    $region2: #{tpu_custom_call.1} parent=1 // loop_pre_header
      _
    $region3: #{tpu_custom_call.1} parent=1 // loop_header
      %s15 = sphi 0, %s19
      %p16 = scmp.ge.s32.totalorder %s15, 4
      %s23 = sphi 0, %s23
      %s25 = sphi 0, %s23
      %s26 = sphi 0, %s25
      %s40 = sphi 0, %s26
      %s46 = sphi 0, %s48
      %s49 = sphi 0, %s46
      %s50 = sphi 0, %s49
      %s66 = sphi 0, %s50
      %s72 = sphi 0, %s74
      %s75 = sphi 0, %s72
      %s76 = sphi 0, %s75
      %s92 = sphi 0, %s76
    $region4: #{tpu_custom_call.1} parent=1 // loop_header_branch
      %18 = sbr.rel (%p16) target = $region8
    $region5: #{tpu_custom_call.1} parent=1 // loop_body
      %s20 = ssub.s32 %s15, 1
      %s21 = ssub.s32 %s15, 2
      %s22 = sadd.s32 %s15, 1
      %s24 = sadd.s32 %s23, 1
      %p27 = scmp.eq.s32.totalorder %s15, 1
      %p28 = scmp.ne.s32.totalorder %s23, %s25
      %p29 = scmp.eq.s32.totalorder %s15, 0
      %p30 = por %p28, %p29
      %p31 = scmp.ne.s32.totalorder %s23, %s25
      %p32 = scmp.eq.s32.totalorder %s20, 1
      %p33 = por %p31, %p32
      %p34 = scmp.ne.s32.totalorder %s25, %s26
      %p35 = scmp.eq.s32.totalorder %s20, 0
      %p36 = por %p34, %p35
      %p37 = scmp.ne.s32.totalorder %s25, %s26
      %p38 = scmp.eq.s32.totalorder %s21, 1
      %p39 = por %p37, %p38
      %p41 = scmp.ne.s32.totalorder %s26, %s40
      %p42 = scmp.eq.s32.totalorder %s21, 0
      %p43 = por %p41, %p42
      %s44 = ssub.s32 %s15, %s22
      %p45 = scmp.eq.s32.totalorder %s44, 0
      %s47 = sadd.s32 %s46, 1
      %s48 = scalar_select %p45, %s46, %s47
      %p51 = pneg %p45
      %p52 = scmp.eq.s32.totalorder %s15, 1
      %p53 = por %p51, %p52
      %p54 = scmp.ne.s32.totalorder %s46, %s49
      %p55 = scmp.eq.s32.totalorder %s15, 0
      %p56 = por %p54, %p55
      %p57 = scmp.ne.s32.totalorder %s46, %s49
      %p58 = scmp.eq.s32.totalorder %s20, 1
      %p59 = por %p57, %p58
      %p60 = scmp.ne.s32.totalorder %s49, %s50
      %p61 = scmp.eq.s32.totalorder %s20, 0
      %p62 = por %p60, %p61
      %p63 = scmp.ne.s32.totalorder %s49, %s50
      %p64 = scmp.eq.s32.totalorder %s21, 1
      %p65 = por %p63, %p64
      %p67 = scmp.ne.s32.totalorder %s50, %s66
      %p68 = scmp.eq.s32.totalorder %s21, 0
      %p69 = por %p67, %p68
      %s70 = ssub.s32 %s15, %s22
      %p71 = scmp.eq.s32.totalorder %s70, 0
      %s73 = sadd.s32 %s72, 1
      %s74 = scalar_select %p71, %s72, %s73
      %p77 = pneg %p71
      %p78 = scmp.eq.s32.totalorder %s15, 1
      %p79 = por %p77, %p78
      %p80 = scmp.ne.s32.totalorder %s72, %s75
      %p81 = scmp.eq.s32.totalorder %s15, 0
      %p82 = por %p80, %p81
      %p83 = scmp.ne.s32.totalorder %s72, %s75
      %p84 = scmp.eq.s32.totalorder %s20, 1
      %p85 = por %p83, %p84
      %p86 = scmp.ne.s32.totalorder %s75, %s76
      %p87 = scmp.eq.s32.totalorder %s20, 0
      %p88 = por %p86, %p87
      %p89 = scmp.ne.s32.totalorder %s75, %s76
      %p90 = scmp.eq.s32.totalorder %s21, 1
      %p91 = por %p89, %p90
      %p93 = scmp.ne.s32.totalorder %s76, %s92
      %p94 = scmp.eq.s32.totalorder %s21, 0
      %p95 = por %p93, %p94
      %p96 = scmp.le.s32.totalorder 1, %s15
      %p97 = scmp.lt.s32.totalorder %s15, 3
      %p98 = pnand %p96, %p97
      %p99 = pneg %p98
      // Predicated region
      $region9: #{tpu_custom_call.1} parent=5 // pred_check
        _
      $region10: #{tpu_custom_call.1} parent=5 // pred_check_branch
        %101 = sbr.rel (%p98) target = $region12
      $region11: #{tpu_custom_call.1} parent=5 // pred_region
        %s102 = ssub.s32 %s15, 1
        // Predicated region
        $region13: #{tpu_custom_call.1} parent=11 // pred_check
          %p103 = pneg %p36
        $region14: #{tpu_custom_call.1} parent=11 // pred_check_branch
          %105 = sbr.rel (%p103) target = $region16
        $region15: #{tpu_custom_call.1} parent=11 // pred_region
          %s107 = ssub.s32 2560, 2560
          %108 = vsyncadd [#allocation3], %s107
          %s109 = sshll.u32 [#allocation2], 4
          %s110 = int_to_ptr.vmem [resolvable:$true] %s109
          %115 = dma.hbm_to_vmem [thread:$0]  %s0, 2560, %s110, [#allocation3], 512, 512, 32
        $region16: #{tpu_custom_call.1} parent=11 // pred_fallthru
          _
      $region12: #{tpu_custom_call.1} parent=5 // pred_fallthru
        _
      %p116 = scmp.lt.s32.totalorder %s15, 2
      // Predicated region
      $region17: #{tpu_custom_call.1} parent=5 // pred_check
        %p117 = pneg %p116
      $region18: #{tpu_custom_call.1} parent=5 // pred_check_branch
        %119 = sbr.rel (%p117) target = $region20
      $region19: #{tpu_custom_call.1} parent=5 // pred_region
        // Predicated region
        $region21: #{tpu_custom_call.1} parent=19 // pred_check
          %p120 = pneg %p56
        $region22: #{tpu_custom_call.1} parent=19 // pred_check_branch
          %122 = sbr.rel (%p120) target = $region24
        $region23: #{tpu_custom_call.1} parent=19 // pred_region
          %s123 = sand.u32 %s46, 1
          %s124 = scalar_lea.sflag [#allocation6], %s123
          %s125 = sand.u32 %s46, 1
          %s126 = smul.addr %s125, 16
          %s127 = scalar_lea.vmem [#allocation5], %s126
          %s128 = smul.u32 2, %s15
          %s130 = ssub.s32 256, 256
          %131 = vsyncadd %s124, %s130
          %s132 = smul.addr %s128, 128
          %s133 = scalar_lea.hbm %s1, %s132
          %s134 = sshll.u32 %s127, 4
          %s135 = int_to_ptr.vmem [resolvable:$true] %s134
          %140 = dma.hbm_to_vmem [thread:$0]  %s133, 256, %s135, %s124, 128, 128, 8
        $region24: #{tpu_custom_call.1} parent=19 // pred_fallthru
          _
      $region20: #{tpu_custom_call.1} parent=5 // pred_fallthru
        _
      %p141 = scmp.le.s32.totalorder 1, %s15
      %p142 = scmp.lt.s32.totalorder %s15, 3
      %p143 = pnand %p141, %p142
      %p144 = pneg %p143
      // Predicated region
      $region25: #{tpu_custom_call.1} parent=5 // pred_check
        _
      $region26: #{tpu_custom_call.1} parent=5 // pred_check_branch
        %146 = sbr.rel (%p143) target = $region28
      $region27: #{tpu_custom_call.1} parent=5 // pred_region
        %s147 = ssub.s32 %s15, 1
        // Predicated region
        $region29: #{tpu_custom_call.1} parent=27 // pred_check
          %p148 = pneg %p36
        $region30: #{tpu_custom_call.1} parent=27 // pred_check_branch
          %150 = sbr.rel (%p148) target = $region32
        $region31: #{tpu_custom_call.1} parent=27 // pred_region
          %151 = dma.done [#allocation3], 2560
        $region32: #{tpu_custom_call.1} parent=27 // pred_fallthru
          _
        %s152 = sand.u32 %s49, 1
        %s153 = scalar_lea.sflag [#allocation6], %s152
        %s154 = sand.u32 %s49, 1
        %s155 = smul.addr %s154, 16
        %s156 = scalar_lea.vmem [#allocation5], %s155
        // Predicated region
        $region33: #{tpu_custom_call.1} parent=27 // pred_check
          %p157 = pneg %p62
        $region34: #{tpu_custom_call.1} parent=27 // pred_check_branch
          %159 = sbr.rel (%p157) target = $region36
        $region35: #{tpu_custom_call.1} parent=27 // pred_region
          %160 = dma.done %s153, 256
        $region36: #{tpu_custom_call.1} parent=27 // pred_fallthru
          _
        %p161 = pneg %p36
        %p162 = pneg %p33
        %s163 = sand.u32 %s49, 1
        %s164 = scalar_lea.sflag [#allocation6], %s163
        %s165 = sand.u32 %s49, 1
        %s166 = smul.addr %s165, 16
        %s167 = scalar_lea.vmem [#allocation5], %s166
        %p168 = pneg %p62
        %p169 = pneg %p59
        %p170 = pneg %p88
        %p171 = pneg %p85
        %s172 = sand.u32 %s75, 1
        %s173 = scalar_lea.sflag [#allocation4], %s172
        %s174 = sand.u32 %s75, 1
        %s175 = smul.addr %s174, 64
        %s176 = scalar_lea.vmem [#allocation7], %s175
        %s177 = smul.u32 2, %s20
        %s178 = smul.u32 2, %s20
        %v179 = vld [vmem:[%s156] sm:$0xff]
        %v180 = vld [vmem:[%s156 + $0x8] sm:$0xff]
        %v181 = vld [vmem:[#allocation2] sm:$0xff]
        %v182 = vld [vmem:[#allocation2 + $0x8] sm:$0xff]
        %v183 = vld [vmem:[#allocation2 + $0x10] sm:$0xff]
        %v184 = vld [vmem:[#allocation2 + $0x18] sm:$0xff]
        %v185 = vld [vmem:[#allocation2 + $0x20] sm:$0xff]
        %v186 = vld [vmem:[#allocation2 + $0x28] sm:$0xff]
        %v187 = vld [vmem:[#allocation2 + $0x30] sm:$0xff]
        %v188 = vld [vmem:[#allocation2 + $0x38] sm:$0xff]
        %v189 = vld [vmem:[#allocation2 + $0x40] sm:$0xff]
        %v190 = vld [vmem:[#allocation2 + $0x48] sm:$0xff]
        %v191 = vld [vmem:[#allocation2 + $0x50] sm:$0xff]
        %v192 = vld [vmem:[#allocation2 + $0x58] sm:$0xff]
        %v193 = vld [vmem:[#allocation2 + $0x60] sm:$0xff]
        %v194 = vld [vmem:[#allocation2 + $0x68] sm:$0xff]
        %v195 = vld [vmem:[#allocation2 + $0x70] sm:$0xff]
        %v196 = vld [vmem:[#allocation2 + $0x78] sm:$0xff]
        %v197 = vld [vmem:[#allocation2 + $0x80] sm:$0x1]
        %v198 = vld [vmem:[#allocation2 + $0x88] sm:$0x1]
        %v199 = vld [vmem:[#allocation2 + $0x90] sm:$0x1]
        %v200 = vld [vmem:[#allocation2 + $0x98] sm:$0x1]
        %vm201 = vcmask 269312
        %v203 = vsel %vm201, %v179, 0
        %v206 = vsel %vm201, %v180, 0
        %vm208 = vcmask 1040384
        %v210 = vsel %vm208, %v197, 0
        %v213 = vsel %vm208, %v198, 0
        %v216 = vsel %vm208, %v199, 0
        %v219 = vsel %vm208, %v200, 0
        %221 = vmatprep.subr.mxu0 0.0
        %222 = vmatpush1.msra.mxu0 0.0
        %223 = vmatprep.subr.mxu0 0.0
        %224 = vmatpush1.msra.mxu0 0.0
        %225 = vmatprep.subr.mxu0 0.0
        %226 = vmatpush1.msra.mxu0 0.0
        %227 = vmatprep.subr.mxu0 0.0
        %228 = vmatpush1.msra.mxu0 0.0
        %229 = vmatprep.subr.mxu0 0.0
        %230 = vmatpush1.msra.mxu0 0.0
        %231 = vmatprep.subr.mxu0 0.0
        %232 = vmatpush1.msra.mxu0 0.0
        %233 = vmatprep.subr.mxu0 0.0
        %234 = vmatpush1.msra.mxu0 0.0
        %235 = vmatprep.subr.mxu0 0.0
        %236 = vmatpush1.msra.mxu0 0.0
        %237 = vmatprep.subr.mxu0 0.0
        %238 = vmatpush1.msra.mxu0 0.0
        %239 = vmatprep.subr.mxu0 0.0
        %240 = vmatpush1.msra.mxu0 0.0
        %241 = vmatprep.subr.mxu0 0.0
        %242 = vmatpush1.msra.mxu0 0.0
        %v243 = vand.u32 %v213, 4294901760
        %244 = vmatprep.subr.mxu0 %v243
        %v245 = vand.u32 %v210, 4294901760
        %246 = vmatpush1.msra.mxu0 %v245
        %v247 = vand.u32 %v194, 4294901760
        %248 = vmatprep.subr.mxu0 %v247
        %v249 = vand.u32 %v193, 4294901760
        %250 = vmatpush1.msra.mxu0 %v249
        %v251 = vand.u32 %v190, 4294901760
        %252 = vmatprep.subr.mxu0 %v251
        %v253 = vand.u32 %v189, 4294901760
        %254 = vmatpush1.msra.mxu0 %v253
        %v255 = vand.u32 %v186, 4294901760
        %256 = vmatprep.subr.mxu0 %v255
        %v257 = vand.u32 %v185, 4294901760
        %258 = vmatpush1.msra.mxu0 %v257
        %v259 = vand.u32 %v182, 4294901760
        %260 = vmatprep.subr.mxu0 %v259
        %v261 = vand.u32 %v181, 4294901760
        %262 = vmatpush1.msra.mxu0 %v261
        %263 = vmatprep.subr.mxu0 0.0
        %264 = vmatpush2.msra.mxu0 0.0
        %265 = vmatprep.subr.mxu0 0.0
        %266 = vmatpush2.msra.mxu0 0.0
        %267 = vmatprep.subr.mxu0 0.0
        %268 = vmatpush2.msra.mxu0 0.0
        %269 = vmatprep.subr.mxu0 0.0
        %270 = vmatpush2.msra.mxu0 0.0
        %271 = vmatprep.subr.mxu0 0.0
        %272 = vmatpush2.msra.mxu0 0.0
        %273 = vmatprep.subr.mxu0 0.0
        %274 = vmatpush2.msra.mxu0 0.0
        %275 = vmatprep.subr.mxu0 0.0
        %276 = vmatpush2.msra.mxu0 0.0
        %277 = vmatprep.subr.mxu0 0.0
        %278 = vmatpush2.msra.mxu0 0.0
        %279 = vmatprep.subr.mxu0 0.0
        %280 = vmatpush2.msra.mxu0 0.0
        %281 = vmatprep.subr.mxu0 0.0
        %282 = vmatpush2.msra.mxu0 0.0
        %283 = vmatprep.subr.mxu0 0.0
        %284 = vmatpush2.msra.mxu0 0.0
        %285 = vmatprep.subr.mxu0 0.0
        %286 = vmatpush2.msra.mxu0 0.0
        %287 = vmatprep.subr.mxu0 0.0
        %288 = vmatpush2.msra.mxu0 0.0
        %289 = vmatprep.subr.mxu0 0.0
        %290 = vmatpush2.msra.mxu0 0.0
        %291 = vmatprep.subr.mxu0 0.0
        %292 = vmatpush2.msra.mxu0 0.0
        %293 = vmatprep.subr.mxu0 0.0
        %294 = vmatpush2.msra.mxu0 0.0
        %295 = vmatprep.mubr.f32.mxu0 0.0
        %v296 = vand.u32 %v203, 4294901760
        %v297 = vsub.f32 %v203, %v296
        %v298 = vand.u32 %v297, 4294901760
        %v299 = vsub.f32 %v297, %v298
        %v300 = vand.u32 %v299, 4294901760
        %301 = vmatmul.mubr.f32.gmra.mxu0 %v300
        %v302 = vpop.f32.mrf.mxu0
        %v303 = vadd.f32 0.0, %v302
        %v304 = vpop.f32.mrf.mxu0
        %v305 = vadd.f32 0.0, %v304
        %306 = vmatprep.mubr.f32.mxu0 0.0
        %v307 = vand.u32 %v206, 4294901760
        %v308 = vsub.f32 %v206, %v307
        %v309 = vand.u32 %v308, 4294901760
        %v310 = vsub.f32 %v308, %v309
        %v311 = vand.u32 %v310, 4294901760
        %312 = vmatmul.mubr.f32.gmra.mxu0 %v311
        %v313 = vpop.f32.mrf.mxu0
        %v314 = vadd.f32 0.0, %v313
        %v315 = vpop.f32.mrf.mxu0
        %v316 = vadd.f32 0.0, %v315
        %317 = vdwg.mxu0
        %318 = vmatprep.subr.mxu0 0.0
        %319 = vmatpush1.msra.mxu0 0.0
        %320 = vmatprep.subr.mxu0 0.0
        %321 = vmatpush1.msra.mxu0 0.0
        %322 = vmatprep.subr.mxu0 0.0
        %323 = vmatpush1.msra.mxu0 0.0
        %324 = vmatprep.subr.mxu0 0.0
        %325 = vmatpush1.msra.mxu0 0.0
        %326 = vmatprep.subr.mxu0 0.0
        %327 = vmatpush1.msra.mxu0 0.0
        %328 = vmatprep.subr.mxu0 0.0
        %329 = vmatpush1.msra.mxu0 0.0
        %330 = vmatprep.subr.mxu0 0.0
        %331 = vmatpush1.msra.mxu0 0.0
        %332 = vmatprep.subr.mxu0 0.0
        %333 = vmatpush1.msra.mxu0 0.0
        %334 = vmatprep.subr.mxu0 0.0
        %335 = vmatpush1.msra.mxu0 0.0
        %336 = vmatprep.subr.mxu0 0.0
        %337 = vmatpush1.msra.mxu0 0.0
        %338 = vmatprep.subr.mxu0 0.0
        %339 = vmatpush1.msra.mxu0 0.0
        %v340 = vand.u32 %v213, 4294901760
        %v341 = vsub.f32 %v213, %v340
        %v342 = vand.u32 %v341, 4294901760
        %v343 = vsub.f32 %v341, %v342
        %v344 = vand.u32 %v343, 4294901760
        %345 = vmatprep.subr.mxu0 %v344
        %v346 = vand.u32 %v210, 4294901760
        %v347 = vsub.f32 %v210, %v346
        %v348 = vand.u32 %v347, 4294901760
        %v349 = vsub.f32 %v347, %v348
        %v350 = vand.u32 %v349, 4294901760
        %351 = vmatpush1.msra.mxu0 %v350
        %v352 = vand.u32 %v194, 4294901760
        %v353 = vsub.f32 %v194, %v352
        %v354 = vand.u32 %v353, 4294901760
        %v355 = vsub.f32 %v353, %v354
        %v356 = vand.u32 %v355, 4294901760
        %357 = vmatprep.subr.mxu0 %v356
        %v358 = vand.u32 %v193, 4294901760
        %v359 = vsub.f32 %v193, %v358
        %v360 = vand.u32 %v359, 4294901760
        %v361 = vsub.f32 %v359, %v360
        %v362 = vand.u32 %v361, 4294901760
        %363 = vmatpush1.msra.mxu0 %v362
        %v364 = vand.u32 %v190, 4294901760
        %v365 = vsub.f32 %v190, %v364
        %v366 = vand.u32 %v365, 4294901760
        %v367 = vsub.f32 %v365, %v366
        %v368 = vand.u32 %v367, 4294901760
        %369 = vmatprep.subr.mxu0 %v368
        %v370 = vand.u32 %v189, 4294901760
        %v371 = vsub.f32 %v189, %v370
        %v372 = vand.u32 %v371, 4294901760
        %v373 = vsub.f32 %v371, %v372
        %v374 = vand.u32 %v373, 4294901760
        %375 = vmatpush1.msra.mxu0 %v374
        %v376 = vand.u32 %v186, 4294901760
        %v377 = vsub.f32 %v186, %v376
        %v378 = vand.u32 %v377, 4294901760
        %v379 = vsub.f32 %v377, %v378
        %v380 = vand.u32 %v379, 4294901760
        %381 = vmatprep.subr.mxu0 %v380
        %v382 = vand.u32 %v185, 4294901760
        %v383 = vsub.f32 %v185, %v382
        %v384 = vand.u32 %v383, 4294901760
        %v385 = vsub.f32 %v383, %v384
        %v386 = vand.u32 %v385, 4294901760
        %387 = vmatpush1.msra.mxu0 %v386
        %v388 = vand.u32 %v182, 4294901760
        %v389 = vsub.f32 %v182, %v388
        %v390 = vand.u32 %v389, 4294901760
        %v391 = vsub.f32 %v389, %v390
        %v392 = vand.u32 %v391, 4294901760
        %393 = vmatprep.subr.mxu0 %v392
        %v394 = vand.u32 %v181, 4294901760
        %v395 = vsub.f32 %v181, %v394
        %v396 = vand.u32 %v395, 4294901760
        %v397 = vsub.f32 %v395, %v396
        %v398 = vand.u32 %v397, 4294901760
        %399 = vmatpush1.msra.mxu0 %v398
        %400 = vmatprep.subr.mxu0 0.0
        %401 = vmatpush2.msra.mxu0 0.0
        %402 = vmatprep.subr.mxu0 0.0
        %403 = vmatpush2.msra.mxu0 0.0
        %404 = vmatprep.subr.mxu0 0.0
        %405 = vmatpush2.msra.mxu0 0.0
        %406 = vmatprep.subr.mxu0 0.0
        %407 = vmatpush2.msra.mxu0 0.0
        %408 = vmatprep.subr.mxu0 0.0
        %409 = vmatpush2.msra.mxu0 0.0
        %410 = vmatprep.subr.mxu0 0.0
        %411 = vmatpush2.msra.mxu0 0.0
        %412 = vmatprep.subr.mxu0 0.0
        %413 = vmatpush2.msra.mxu0 0.0
        %414 = vmatprep.subr.mxu0 0.0
        %415 = vmatpush2.msra.mxu0 0.0
        %416 = vmatprep.subr.mxu0 0.0
        %417 = vmatpush2.msra.mxu0 0.0
        %418 = vmatprep.subr.mxu0 0.0
        %419 = vmatpush2.msra.mxu0 0.0
        %420 = vmatprep.subr.mxu0 0.0
        %421 = vmatpush2.msra.mxu0 0.0
        %422 = vmatprep.subr.mxu0 0.0
        %423 = vmatpush2.msra.mxu0 0.0
        %424 = vmatprep.subr.mxu0 0.0
        %425 = vmatpush2.msra.mxu0 0.0
        %426 = vmatprep.subr.mxu0 0.0
        %427 = vmatpush2.msra.mxu0 0.0
        %428 = vmatprep.subr.mxu0 0.0
        %429 = vmatpush2.msra.mxu0 0.0
        %430 = vmatprep.subr.mxu0 0.0
        %431 = vmatpush2.msra.mxu0 0.0
        %432 = vmatprep.mubr.f32.mxu0 0.0
        %v433 = vand.u32 %v203, 4294901760
        %434 = vmatmul.mubr.f32.gmra.mxu0 %v433
        %v435 = vpop.f32.mrf.mxu0
        %v436 = vadd.f32 %v303, %v435
        %v437 = vpop.f32.mrf.mxu0
        %v438 = vadd.f32 %v305, %v437
        %439 = vmatprep.mubr.f32.mxu0 0.0
        %v440 = vand.u32 %v206, 4294901760
        %441 = vmatmul.mubr.f32.gmra.mxu0 %v440
        %v442 = vpop.f32.mrf.mxu0
        %v443 = vadd.f32 %v314, %v442
        %v444 = vpop.f32.mrf.mxu0
        %v445 = vadd.f32 %v316, %v444
        %446 = vdwg.mxu0
        %447 = vmatprep.subr.mxu0 0.0
        %448 = vmatpush1.msra.mxu0 0.0
        %449 = vmatprep.subr.mxu0 0.0
        %450 = vmatpush1.msra.mxu0 0.0
        %451 = vmatprep.subr.mxu0 0.0
        %452 = vmatpush1.msra.mxu0 0.0
        %453 = vmatprep.subr.mxu0 0.0
        %454 = vmatpush1.msra.mxu0 0.0
        %455 = vmatprep.subr.mxu0 0.0
        %456 = vmatpush1.msra.mxu0 0.0
        %457 = vmatprep.subr.mxu0 0.0
        %458 = vmatpush1.msra.mxu0 0.0
        %459 = vmatprep.subr.mxu0 0.0
        %460 = vmatpush1.msra.mxu0 0.0
        %461 = vmatprep.subr.mxu0 0.0
        %462 = vmatpush1.msra.mxu0 0.0
        %463 = vmatprep.subr.mxu0 0.0
        %464 = vmatpush1.msra.mxu0 0.0
        %465 = vmatprep.subr.mxu0 0.0
        %466 = vmatpush1.msra.mxu0 0.0
        %467 = vmatprep.subr.mxu0 0.0
        %468 = vmatpush1.msra.mxu0 0.0
        %v469 = vand.u32 %v213, 4294901760
        %v470 = vsub.f32 %v213, %v469
        %471 = vmatprep.subr.mxu0 %v470
        %v472 = vand.u32 %v210, 4294901760
        %v473 = vsub.f32 %v210, %v472
        %474 = vmatpush1.msra.mxu0 %v473
        %v475 = vand.u32 %v194, 4294901760
        %v476 = vsub.f32 %v194, %v475
        %477 = vmatprep.subr.mxu0 %v476
        %v478 = vand.u32 %v193, 4294901760
        %v479 = vsub.f32 %v193, %v478
        %480 = vmatpush1.msra.mxu0 %v479
        %v481 = vand.u32 %v190, 4294901760
        %v482 = vsub.f32 %v190, %v481
        %483 = vmatprep.subr.mxu0 %v482
        %v484 = vand.u32 %v189, 4294901760
        %v485 = vsub.f32 %v189, %v484
        %486 = vmatpush1.msra.mxu0 %v485
        %v487 = vand.u32 %v186, 4294901760
        %v488 = vsub.f32 %v186, %v487
        %489 = vmatprep.subr.mxu0 %v488
        %v490 = vand.u32 %v185, 4294901760
        %v491 = vsub.f32 %v185, %v490
        %492 = vmatpush1.msra.mxu0 %v491
        %v493 = vand.u32 %v182, 4294901760
        %v494 = vsub.f32 %v182, %v493
        %495 = vmatprep.subr.mxu0 %v494
        %v496 = vand.u32 %v181, 4294901760
        %v497 = vsub.f32 %v181, %v496
        %498 = vmatpush1.msra.mxu0 %v497
        %499 = vmatprep.subr.mxu0 0.0
        %500 = vmatpush2.msra.mxu0 0.0
        %501 = vmatprep.subr.mxu0 0.0
        %502 = vmatpush2.msra.mxu0 0.0
        %503 = vmatprep.subr.mxu0 0.0
        %504 = vmatpush2.msra.mxu0 0.0
        %505 = vmatprep.subr.mxu0 0.0
        %506 = vmatpush2.msra.mxu0 0.0
        %507 = vmatprep.subr.mxu0 0.0
        %508 = vmatpush2.msra.mxu0 0.0
        %509 = vmatprep.subr.mxu0 0.0
        %510 = vmatpush2.msra.mxu0 0.0
        %511 = vmatprep.subr.mxu0 0.0
        %512 = vmatpush2.msra.mxu0 0.0
        %513 = vmatprep.subr.mxu0 0.0
        %514 = vmatpush2.msra.mxu0 0.0
        %515 = vmatprep.subr.mxu0 0.0
        %516 = vmatpush2.msra.mxu0 0.0
        %517 = vmatprep.subr.mxu0 0.0
        %518 = vmatpush2.msra.mxu0 0.0
        %519 = vmatprep.subr.mxu0 0.0
        %520 = vmatpush2.msra.mxu0 0.0
        %521 = vmatprep.subr.mxu0 0.0
        %522 = vmatpush2.msra.mxu0 0.0
        %523 = vmatprep.subr.mxu0 0.0
        %524 = vmatpush2.msra.mxu0 0.0
        %525 = vmatprep.subr.mxu0 0.0
        %526 = vmatpush2.msra.mxu0 0.0
        %527 = vmatprep.subr.mxu0 0.0
        %528 = vmatpush2.msra.mxu0 0.0
        %529 = vmatprep.subr.mxu0 0.0
        %530 = vmatpush2.msra.mxu0 0.0
        %531 = vmatprep.mubr.f32.mxu0 0.0
        %v532 = vand.u32 %v203, 4294901760
        %v533 = vsub.f32 %v203, %v532
        %534 = vmatmul.mubr.f32.gmra.mxu0 %v533
        %v535 = vpop.f32.mrf.mxu0
        %v536 = vadd.f32 %v436, %v535
        %v537 = vpop.f32.mrf.mxu0
        %v538 = vadd.f32 %v438, %v537
        %539 = vmatprep.mubr.f32.mxu0 0.0
        %v540 = vand.u32 %v206, 4294901760
        %v541 = vsub.f32 %v206, %v540
        %542 = vmatmul.mubr.f32.gmra.mxu0 %v541
        %v543 = vpop.f32.mrf.mxu0
        %v544 = vadd.f32 %v443, %v543
        %v545 = vpop.f32.mrf.mxu0
        %v546 = vadd.f32 %v445, %v545
        %547 = vdwg.mxu0
        %548 = vmatprep.subr.mxu0 0.0
        %549 = vmatpush1.msra.mxu0 0.0
        %550 = vmatprep.subr.mxu0 0.0
        %551 = vmatpush1.msra.mxu0 0.0
        %552 = vmatprep.subr.mxu0 0.0
        %553 = vmatpush1.msra.mxu0 0.0
        %554 = vmatprep.subr.mxu0 0.0
        %555 = vmatpush1.msra.mxu0 0.0
        %556 = vmatprep.subr.mxu0 0.0
        %557 = vmatpush1.msra.mxu0 0.0
        %558 = vmatprep.subr.mxu0 0.0
        %559 = vmatpush1.msra.mxu0 0.0
        %560 = vmatprep.subr.mxu0 0.0
        %561 = vmatpush1.msra.mxu0 0.0
        %562 = vmatprep.subr.mxu0 0.0
        %563 = vmatpush1.msra.mxu0 0.0
        %564 = vmatprep.subr.mxu0 0.0
        %565 = vmatpush1.msra.mxu0 0.0
        %566 = vmatprep.subr.mxu0 0.0
        %567 = vmatpush1.msra.mxu0 0.0
        %568 = vmatprep.subr.mxu0 0.0
        %569 = vmatpush1.msra.mxu0 0.0
        %v570 = vand.u32 %v213, 4294901760
        %571 = vmatprep.subr.mxu0 %v570
        %v572 = vand.u32 %v210, 4294901760
        %573 = vmatpush1.msra.mxu0 %v572
        %v574 = vand.u32 %v194, 4294901760
        %575 = vmatprep.subr.mxu0 %v574
        %v576 = vand.u32 %v193, 4294901760
        %577 = vmatpush1.msra.mxu0 %v576
        %v578 = vand.u32 %v190, 4294901760
        %579 = vmatprep.subr.mxu0 %v578
        %v580 = vand.u32 %v189, 4294901760
        %581 = vmatpush1.msra.mxu0 %v580
        %v582 = vand.u32 %v186, 4294901760
        %583 = vmatprep.subr.mxu0 %v582
        %v584 = vand.u32 %v185, 4294901760
        %585 = vmatpush1.msra.mxu0 %v584
        %v586 = vand.u32 %v182, 4294901760
        %587 = vmatprep.subr.mxu0 %v586
        %v588 = vand.u32 %v181, 4294901760
        %589 = vmatpush1.msra.mxu0 %v588
        %590 = vmatprep.subr.mxu0 0.0
        %591 = vmatpush2.msra.mxu0 0.0
        %592 = vmatprep.subr.mxu0 0.0
        %593 = vmatpush2.msra.mxu0 0.0
        %594 = vmatprep.subr.mxu0 0.0
        %595 = vmatpush2.msra.mxu0 0.0
        %596 = vmatprep.subr.mxu0 0.0
        %597 = vmatpush2.msra.mxu0 0.0
        %598 = vmatprep.subr.mxu0 0.0
        %599 = vmatpush2.msra.mxu0 0.0
        %600 = vmatprep.subr.mxu0 0.0
        %601 = vmatpush2.msra.mxu0 0.0
        %602 = vmatprep.subr.mxu0 0.0
        %603 = vmatpush2.msra.mxu0 0.0
        %604 = vmatprep.subr.mxu0 0.0
        %605 = vmatpush2.msra.mxu0 0.0
        %606 = vmatprep.subr.mxu0 0.0
        %607 = vmatpush2.msra.mxu0 0.0
        %608 = vmatprep.subr.mxu0 0.0
        %609 = vmatpush2.msra.mxu0 0.0
        %610 = vmatprep.subr.mxu0 0.0
        %611 = vmatpush2.msra.mxu0 0.0
        %612 = vmatprep.subr.mxu0 0.0
        %613 = vmatpush2.msra.mxu0 0.0
        %614 = vmatprep.subr.mxu0 0.0
        %615 = vmatpush2.msra.mxu0 0.0
        %616 = vmatprep.subr.mxu0 0.0
        %617 = vmatpush2.msra.mxu0 0.0
        %618 = vmatprep.subr.mxu0 0.0
        %619 = vmatpush2.msra.mxu0 0.0
        %620 = vmatprep.subr.mxu0 0.0
        %621 = vmatpush2.msra.mxu0 0.0
        %622 = vmatprep.mubr.f32.mxu0 0.0
        %v623 = vand.u32 %v203, 4294901760
        %v624 = vsub.f32 %v203, %v623
        %v625 = vand.u32 %v624, 4294901760
        %626 = vmatmul.mubr.f32.gmra.mxu0 %v625
        %v627 = vpop.f32.mrf.mxu0
        %v628 = vadd.f32 %v536, %v627
        %v629 = vpop.f32.mrf.mxu0
        %v630 = vadd.f32 %v538, %v629
        %631 = vmatprep.mubr.f32.mxu0 0.0
        %v632 = vand.u32 %v206, 4294901760
        %v633 = vsub.f32 %v206, %v632
        %v634 = vand.u32 %v633, 4294901760
        %635 = vmatmul.mubr.f32.gmra.mxu0 %v634
        %v636 = vpop.f32.mrf.mxu0
        %v637 = vadd.f32 %v544, %v636
        %v638 = vpop.f32.mrf.mxu0
        %v639 = vadd.f32 %v546, %v638
        %640 = vdwg.mxu0
        %641 = vmatprep.subr.mxu0 0.0
        %642 = vmatpush1.msra.mxu0 0.0
        %643 = vmatprep.subr.mxu0 0.0
        %644 = vmatpush1.msra.mxu0 0.0
        %645 = vmatprep.subr.mxu0 0.0
        %646 = vmatpush1.msra.mxu0 0.0
        %647 = vmatprep.subr.mxu0 0.0
        %648 = vmatpush1.msra.mxu0 0.0
        %649 = vmatprep.subr.mxu0 0.0
        %650 = vmatpush1.msra.mxu0 0.0
        %651 = vmatprep.subr.mxu0 0.0
        %652 = vmatpush1.msra.mxu0 0.0
        %653 = vmatprep.subr.mxu0 0.0
        %654 = vmatpush1.msra.mxu0 0.0
        %655 = vmatprep.subr.mxu0 0.0
        %656 = vmatpush1.msra.mxu0 0.0
        %657 = vmatprep.subr.mxu0 0.0
        %658 = vmatpush1.msra.mxu0 0.0
        %659 = vmatprep.subr.mxu0 0.0
        %660 = vmatpush1.msra.mxu0 0.0
        %661 = vmatprep.subr.mxu0 0.0
        %662 = vmatpush1.msra.mxu0 0.0
        %v663 = vand.u32 %v213, 4294901760
        %v664 = vsub.f32 %v213, %v663
        %v665 = vand.u32 %v664, 4294901760
        %666 = vmatprep.subr.mxu0 %v665
        %v667 = vand.u32 %v210, 4294901760
        %v668 = vsub.f32 %v210, %v667
        %v669 = vand.u32 %v668, 4294901760
        %670 = vmatpush1.msra.mxu0 %v669
        %v671 = vand.u32 %v194, 4294901760
        %v672 = vsub.f32 %v194, %v671
        %v673 = vand.u32 %v672, 4294901760
        %674 = vmatprep.subr.mxu0 %v673
        %v675 = vand.u32 %v193, 4294901760
        %v676 = vsub.f32 %v193, %v675
        %v677 = vand.u32 %v676, 4294901760
        %678 = vmatpush1.msra.mxu0 %v677
        %v679 = vand.u32 %v190, 4294901760
        %v680 = vsub.f32 %v190, %v679
        %v681 = vand.u32 %v680, 4294901760
        %682 = vmatprep.subr.mxu0 %v681
        %v683 = vand.u32 %v189, 4294901760
        %v684 = vsub.f32 %v189, %v683
        %v685 = vand.u32 %v684, 4294901760
        %686 = vmatpush1.msra.mxu0 %v685
        %v687 = vand.u32 %v186, 4294901760
        %v688 = vsub.f32 %v186, %v687
        %v689 = vand.u32 %v688, 4294901760
        %690 = vmatprep.subr.mxu0 %v689
        %v691 = vand.u32 %v185, 4294901760
        %v692 = vsub.f32 %v185, %v691
        %v693 = vand.u32 %v692, 4294901760
        %694 = vmatpush1.msra.mxu0 %v693
        %v695 = vand.u32 %v182, 4294901760
        %v696 = vsub.f32 %v182, %v695
        %v697 = vand.u32 %v696, 4294901760
        %698 = vmatprep.subr.mxu0 %v697
        %v699 = vand.u32 %v181, 4294901760
        %v700 = vsub.f32 %v181, %v699
        %v701 = vand.u32 %v700, 4294901760
        %702 = vmatpush1.msra.mxu0 %v701
        %703 = vmatprep.subr.mxu0 0.0
        %704 = vmatpush2.msra.mxu0 0.0
        %705 = vmatprep.subr.mxu0 0.0
        %706 = vmatpush2.msra.mxu0 0.0
        %707 = vmatprep.subr.mxu0 0.0
        %708 = vmatpush2.msra.mxu0 0.0
        %709 = vmatprep.subr.mxu0 0.0
        %710 = vmatpush2.msra.mxu0 0.0
        %711 = vmatprep.subr.mxu0 0.0
        %712 = vmatpush2.msra.mxu0 0.0
        %713 = vmatprep.subr.mxu0 0.0
        %714 = vmatpush2.msra.mxu0 0.0
        %715 = vmatprep.subr.mxu0 0.0
        %716 = vmatpush2.msra.mxu0 0.0
        %717 = vmatprep.subr.mxu0 0.0
        %718 = vmatpush2.msra.mxu0 0.0
        %719 = vmatprep.subr.mxu0 0.0
        %720 = vmatpush2.msra.mxu0 0.0
        %721 = vmatprep.subr.mxu0 0.0
        %722 = vmatpush2.msra.mxu0 0.0
        %723 = vmatprep.subr.mxu0 0.0
        %724 = vmatpush2.msra.mxu0 0.0
        %725 = vmatprep.subr.mxu0 0.0
        %726 = vmatpush2.msra.mxu0 0.0
        %727 = vmatprep.subr.mxu0 0.0
        %728 = vmatpush2.msra.mxu0 0.0
        %729 = vmatprep.subr.mxu0 0.0
        %730 = vmatpush2.msra.mxu0 0.0
        %731 = vmatprep.subr.mxu0 0.0
        %732 = vmatpush2.msra.mxu0 0.0
        %733 = vmatprep.subr.mxu0 0.0
        %734 = vmatpush2.msra.mxu0 0.0
        %735 = vmatprep.mubr.f32.mxu0 0.0
        %v736 = vand.u32 %v203, 4294901760
        %737 = vmatmul.mubr.f32.gmra.mxu0 %v736
        %v738 = vpop.f32.mrf.mxu0
        %v739 = vadd.f32 %v628, %v738
        %v740 = vpop.f32.mrf.mxu0
        %v741 = vadd.f32 %v630, %v740
        %742 = vmatprep.mubr.f32.mxu0 0.0
        %v743 = vand.u32 %v206, 4294901760
        %744 = vmatmul.mubr.f32.gmra.mxu0 %v743
        %v745 = vpop.f32.mrf.mxu0
        %v746 = vadd.f32 %v637, %v745
        %v747 = vpop.f32.mrf.mxu0
        %v748 = vadd.f32 %v639, %v747
        %749 = vdwg.mxu0
        %750 = vmatprep.subr.mxu0 0.0
        %751 = vmatpush1.msra.mxu0 0.0
        %752 = vmatprep.subr.mxu0 0.0
        %753 = vmatpush1.msra.mxu0 0.0
        %754 = vmatprep.subr.mxu0 0.0
        %755 = vmatpush1.msra.mxu0 0.0
        %756 = vmatprep.subr.mxu0 0.0
        %757 = vmatpush1.msra.mxu0 0.0
        %758 = vmatprep.subr.mxu0 0.0
        %759 = vmatpush1.msra.mxu0 0.0
        %760 = vmatprep.subr.mxu0 0.0
        %761 = vmatpush1.msra.mxu0 0.0
        %762 = vmatprep.subr.mxu0 0.0
        %763 = vmatpush1.msra.mxu0 0.0
        %764 = vmatprep.subr.mxu0 0.0
        %765 = vmatpush1.msra.mxu0 0.0
        %766 = vmatprep.subr.mxu0 0.0
        %767 = vmatpush1.msra.mxu0 0.0
        %768 = vmatprep.subr.mxu0 0.0
        %769 = vmatpush1.msra.mxu0 0.0
        %770 = vmatprep.subr.mxu0 0.0
        %771 = vmatpush1.msra.mxu0 0.0
        %v772 = vand.u32 %v213, 4294901760
        %773 = vmatprep.subr.mxu0 %v772
        %v774 = vand.u32 %v210, 4294901760
        %775 = vmatpush1.msra.mxu0 %v774
        %v776 = vand.u32 %v194, 4294901760
        %777 = vmatprep.subr.mxu0 %v776
        %v778 = vand.u32 %v193, 4294901760
        %779 = vmatpush1.msra.mxu0 %v778
        %v780 = vand.u32 %v190, 4294901760
        %781 = vmatprep.subr.mxu0 %v780
        %v782 = vand.u32 %v189, 4294901760
        %783 = vmatpush1.msra.mxu0 %v782
        %v784 = vand.u32 %v186, 4294901760
        %785 = vmatprep.subr.mxu0 %v784
        %v786 = vand.u32 %v185, 4294901760
        %787 = vmatpush1.msra.mxu0 %v786
        %v788 = vand.u32 %v182, 4294901760
        %789 = vmatprep.subr.mxu0 %v788
        %v790 = vand.u32 %v181, 4294901760
        %791 = vmatpush1.msra.mxu0 %v790
        %792 = vmatprep.subr.mxu0 0.0
        %793 = vmatpush2.msra.mxu0 0.0
        %794 = vmatprep.subr.mxu0 0.0
        %795 = vmatpush2.msra.mxu0 0.0
        %796 = vmatprep.subr.mxu0 0.0
        %797 = vmatpush2.msra.mxu0 0.0
        %798 = vmatprep.subr.mxu0 0.0
        %799 = vmatpush2.msra.mxu0 0.0
        %800 = vmatprep.subr.mxu0 0.0
        %801 = vmatpush2.msra.mxu0 0.0
        %802 = vmatprep.subr.mxu0 0.0
        %803 = vmatpush2.msra.mxu0 0.0
        %804 = vmatprep.subr.mxu0 0.0
        %805 = vmatpush2.msra.mxu0 0.0
        %806 = vmatprep.subr.mxu0 0.0
        %807 = vmatpush2.msra.mxu0 0.0
        %808 = vmatprep.subr.mxu0 0.0
        %809 = vmatpush2.msra.mxu0 0.0
        %810 = vmatprep.subr.mxu0 0.0
        %811 = vmatpush2.msra.mxu0 0.0
        %812 = vmatprep.subr.mxu0 0.0
        %813 = vmatpush2.msra.mxu0 0.0
        %814 = vmatprep.subr.mxu0 0.0
        %815 = vmatpush2.msra.mxu0 0.0
        %816 = vmatprep.subr.mxu0 0.0
        %817 = vmatpush2.msra.mxu0 0.0
        %818 = vmatprep.subr.mxu0 0.0
        %819 = vmatpush2.msra.mxu0 0.0
        %820 = vmatprep.subr.mxu0 0.0
        %821 = vmatpush2.msra.mxu0 0.0
        %822 = vmatprep.subr.mxu0 0.0
        %823 = vmatpush2.msra.mxu0 0.0
        %824 = vmatprep.mubr.f32.mxu0 0.0
        %v825 = vand.u32 %v203, 4294901760
        %826 = vmatmul.mubr.f32.gmra.mxu0 %v825
        %v827 = vpop.f32.mrf.mxu0
        %v828 = vadd.f32 %v739, %v827
        %v829 = vpop.f32.mrf.mxu0
        %v830 = vadd.f32 %v741, %v829
        %831 = vmatprep.mubr.f32.mxu0 0.0
        %v832 = vand.u32 %v206, 4294901760
        %833 = vmatmul.mubr.f32.gmra.mxu0 %v832
        %v834 = vpop.f32.mrf.mxu0
        %v835 = vadd.f32 %v746, %v834
        %v836 = vpop.f32.mrf.mxu0
        %v837 = vadd.f32 %v748, %v836
        %838 = vdwg.mxu0
        %839 = vmatprep.subr.mxu0 0.0
        %840 = vmatpush1.msra.mxu0 0.0
        %841 = vmatprep.subr.mxu0 0.0
        %842 = vmatpush1.msra.mxu0 0.0
        %843 = vmatprep.subr.mxu0 0.0
        %844 = vmatpush1.msra.mxu0 0.0
        %845 = vmatprep.subr.mxu0 0.0
        %846 = vmatpush1.msra.mxu0 0.0
        %847 = vmatprep.subr.mxu0 0.0
        %848 = vmatpush1.msra.mxu0 0.0
        %849 = vmatprep.subr.mxu0 0.0
        %850 = vmatpush1.msra.mxu0 0.0
        %851 = vmatprep.subr.mxu0 0.0
        %852 = vmatpush1.msra.mxu0 0.0
        %853 = vmatprep.subr.mxu0 0.0
        %854 = vmatpush1.msra.mxu0 0.0
        %855 = vmatprep.subr.mxu0 0.0
        %856 = vmatpush1.msra.mxu0 0.0
        %857 = vmatprep.subr.mxu0 0.0
        %858 = vmatpush1.msra.mxu0 0.0
        %859 = vmatprep.subr.mxu0 0.0
        %860 = vmatpush1.msra.mxu0 0.0
        %v861 = vand.u32 %v219, 4294901760
        %862 = vmatprep.subr.mxu0 %v861
        %v863 = vand.u32 %v216, 4294901760
        %864 = vmatpush1.msra.mxu0 %v863
        %v865 = vand.u32 %v196, 4294901760
        %866 = vmatprep.subr.mxu0 %v865
        %v867 = vand.u32 %v195, 4294901760
        %868 = vmatpush1.msra.mxu0 %v867
        %v869 = vand.u32 %v192, 4294901760
        %870 = vmatprep.subr.mxu0 %v869
        %v871 = vand.u32 %v191, 4294901760
        %872 = vmatpush1.msra.mxu0 %v871
        %v873 = vand.u32 %v188, 4294901760
        %874 = vmatprep.subr.mxu0 %v873
        %v875 = vand.u32 %v187, 4294901760
        %876 = vmatpush1.msra.mxu0 %v875
        %v877 = vand.u32 %v184, 4294901760
        %878 = vmatprep.subr.mxu0 %v877
        %v879 = vand.u32 %v183, 4294901760
        %880 = vmatpush1.msra.mxu0 %v879
        %881 = vmatprep.subr.mxu0 0.0
        %882 = vmatpush2.msra.mxu0 0.0
        %883 = vmatprep.subr.mxu0 0.0
        %884 = vmatpush2.msra.mxu0 0.0
        %885 = vmatprep.subr.mxu0 0.0
        %886 = vmatpush2.msra.mxu0 0.0
        %887 = vmatprep.subr.mxu0 0.0
        %888 = vmatpush2.msra.mxu0 0.0
        %889 = vmatprep.subr.mxu0 0.0
        %890 = vmatpush2.msra.mxu0 0.0
        %891 = vmatprep.subr.mxu0 0.0
        %892 = vmatpush2.msra.mxu0 0.0
        %893 = vmatprep.subr.mxu0 0.0
        %894 = vmatpush2.msra.mxu0 0.0
        %895 = vmatprep.subr.mxu0 0.0
        %896 = vmatpush2.msra.mxu0 0.0
        %897 = vmatprep.subr.mxu0 0.0
        %898 = vmatpush2.msra.mxu0 0.0
        %899 = vmatprep.subr.mxu0 0.0
        %900 = vmatpush2.msra.mxu0 0.0
        %901 = vmatprep.subr.mxu0 0.0
        %902 = vmatpush2.msra.mxu0 0.0
        %903 = vmatprep.subr.mxu0 0.0
        %904 = vmatpush2.msra.mxu0 0.0
        %905 = vmatprep.subr.mxu0 0.0
        %906 = vmatpush2.msra.mxu0 0.0
        %907 = vmatprep.subr.mxu0 0.0
        %908 = vmatpush2.msra.mxu0 0.0
        %909 = vmatprep.subr.mxu0 0.0
        %910 = vmatpush2.msra.mxu0 0.0
        %911 = vmatprep.subr.mxu0 0.0
        %912 = vmatpush2.msra.mxu0 0.0
        %913 = vmatprep.mubr.f32.mxu0 0.0
        %v914 = vand.u32 %v203, 4294901760
        %v915 = vsub.f32 %v203, %v914
        %v916 = vand.u32 %v915, 4294901760
        %v917 = vsub.f32 %v915, %v916
        %v918 = vand.u32 %v917, 4294901760
        %919 = vmatmul.mubr.f32.gmra.mxu0 %v918
        %v920 = vpop.f32.mrf.mxu0
        %v921 = vadd.f32 0.0, %v920
        %v922 = vpop.f32.mrf.mxu0
        %v923 = vadd.f32 0.0, %v922
        %924 = vmatprep.mubr.f32.mxu0 0.0
        %v925 = vand.u32 %v206, 4294901760
        %v926 = vsub.f32 %v206, %v925
        %v927 = vand.u32 %v926, 4294901760
        %v928 = vsub.f32 %v926, %v927
        %v929 = vand.u32 %v928, 4294901760
        %930 = vmatmul.mubr.f32.gmra.mxu0 %v929
        %v931 = vpop.f32.mrf.mxu0
        %v932 = vadd.f32 0.0, %v931
        %v933 = vpop.f32.mrf.mxu0
        %v934 = vadd.f32 0.0, %v933
        %935 = vdwg.mxu0
        %936 = vmatprep.subr.mxu0 0.0
        %937 = vmatpush1.msra.mxu0 0.0
        %938 = vmatprep.subr.mxu0 0.0
        %939 = vmatpush1.msra.mxu0 0.0
        %940 = vmatprep.subr.mxu0 0.0
        %941 = vmatpush1.msra.mxu0 0.0
        %942 = vmatprep.subr.mxu0 0.0
        %943 = vmatpush1.msra.mxu0 0.0
        %944 = vmatprep.subr.mxu0 0.0
        %945 = vmatpush1.msra.mxu0 0.0
        %946 = vmatprep.subr.mxu0 0.0
        %947 = vmatpush1.msra.mxu0 0.0
        %948 = vmatprep.subr.mxu0 0.0
        %949 = vmatpush1.msra.mxu0 0.0
        %950 = vmatprep.subr.mxu0 0.0
        %951 = vmatpush1.msra.mxu0 0.0
        %952 = vmatprep.subr.mxu0 0.0
        %953 = vmatpush1.msra.mxu0 0.0
        %954 = vmatprep.subr.mxu0 0.0
        %955 = vmatpush1.msra.mxu0 0.0
        %956 = vmatprep.subr.mxu0 0.0
        %957 = vmatpush1.msra.mxu0 0.0
        %v958 = vand.u32 %v219, 4294901760
        %v959 = vsub.f32 %v219, %v958
        %v960 = vand.u32 %v959, 4294901760
        %v961 = vsub.f32 %v959, %v960
        %v962 = vand.u32 %v961, 4294901760
        %963 = vmatprep.subr.mxu0 %v962
        %v964 = vand.u32 %v216, 4294901760
        %v965 = vsub.f32 %v216, %v964
        %v966 = vand.u32 %v965, 4294901760
        %v967 = vsub.f32 %v965, %v966
        %v968 = vand.u32 %v967, 4294901760
        %969 = vmatpush1.msra.mxu0 %v968
        %v970 = vand.u32 %v196, 4294901760
        %v971 = vsub.f32 %v196, %v970
        %v972 = vand.u32 %v971, 4294901760
        %v973 = vsub.f32 %v971, %v972
        %v974 = vand.u32 %v973, 4294901760
        %975 = vmatprep.subr.mxu0 %v974
        %v976 = vand.u32 %v195, 4294901760
        %v977 = vsub.f32 %v195, %v976
        %v978 = vand.u32 %v977, 4294901760
        %v979 = vsub.f32 %v977, %v978
        %v980 = vand.u32 %v979, 4294901760
        %981 = vmatpush1.msra.mxu0 %v980
        %v982 = vand.u32 %v192, 4294901760
        %v983 = vsub.f32 %v192, %v982
        %v984 = vand.u32 %v983, 4294901760
        %v985 = vsub.f32 %v983, %v984
        %v986 = vand.u32 %v985, 4294901760
        %987 = vmatprep.subr.mxu0 %v986
        %v988 = vand.u32 %v191, 4294901760
        %v989 = vsub.f32 %v191, %v988
        %v990 = vand.u32 %v989, 4294901760
        %v991 = vsub.f32 %v989, %v990
        %v992 = vand.u32 %v991, 4294901760
        %993 = vmatpush1.msra.mxu0 %v992
        %v994 = vand.u32 %v188, 4294901760
        %v995 = vsub.f32 %v188, %v994
        %v996 = vand.u32 %v995, 4294901760
        %v997 = vsub.f32 %v995, %v996
        %v998 = vand.u32 %v997, 4294901760
        %999 = vmatprep.subr.mxu0 %v998
        %v1000 = vand.u32 %v187, 4294901760
        %v1001 = vsub.f32 %v187, %v1000
        %v1002 = vand.u32 %v1001, 4294901760
        %v1003 = vsub.f32 %v1001, %v1002
        %v1004 = vand.u32 %v1003, 4294901760
        %1005 = vmatpush1.msra.mxu0 %v1004
        %v1006 = vand.u32 %v184, 4294901760
        %v1007 = vsub.f32 %v184, %v1006
        %v1008 = vand.u32 %v1007, 4294901760
        %v1009 = vsub.f32 %v1007, %v1008
        %v1010 = vand.u32 %v1009, 4294901760
        %1011 = vmatprep.subr.mxu0 %v1010
        %v1012 = vand.u32 %v183, 4294901760
        %v1013 = vsub.f32 %v183, %v1012
        %v1014 = vand.u32 %v1013, 4294901760
        %v1015 = vsub.f32 %v1013, %v1014
        %v1016 = vand.u32 %v1015, 4294901760
        %1017 = vmatpush1.msra.mxu0 %v1016
        %1018 = vmatprep.subr.mxu0 0.0
        %1019 = vmatpush2.msra.mxu0 0.0
        %1020 = vmatprep.subr.mxu0 0.0
        %1021 = vmatpush2.msra.mxu0 0.0
        %1022 = vmatprep.subr.mxu0 0.0
        %1023 = vmatpush2.msra.mxu0 0.0
        %1024 = vmatprep.subr.mxu0 0.0
        %1025 = vmatpush2.msra.mxu0 0.0
        %1026 = vmatprep.subr.mxu0 0.0
        %1027 = vmatpush2.msra.mxu0 0.0
        %1028 = vmatprep.subr.mxu0 0.0
        %1029 = vmatpush2.msra.mxu0 0.0
        %1030 = vmatprep.subr.mxu0 0.0
        %1031 = vmatpush2.msra.mxu0 0.0
        %1032 = vmatprep.subr.mxu0 0.0
        %1033 = vmatpush2.msra.mxu0 0.0
        %1034 = vmatprep.subr.mxu0 0.0
        %1035 = vmatpush2.msra.mxu0 0.0
        %1036 = vmatprep.subr.mxu0 0.0
        %1037 = vmatpush2.msra.mxu0 0.0
        %1038 = vmatprep.subr.mxu0 0.0
        %1039 = vmatpush2.msra.mxu0 0.0
        %1040 = vmatprep.subr.mxu0 0.0
        %1041 = vmatpush2.msra.mxu0 0.0
        %1042 = vmatprep.subr.mxu0 0.0
        %1043 = vmatpush2.msra.mxu0 0.0
        %1044 = vmatprep.subr.mxu0 0.0
        %1045 = vmatpush2.msra.mxu0 0.0
        %1046 = vmatprep.subr.mxu0 0.0
        %1047 = vmatpush2.msra.mxu0 0.0
        %1048 = vmatprep.subr.mxu0 0.0
        %1049 = vmatpush2.msra.mxu0 0.0
        %1050 = vmatprep.mubr.f32.mxu0 0.0
        %v1051 = vand.u32 %v203, 4294901760
        %1052 = vmatmul.mubr.f32.gmra.mxu0 %v1051
        %v1053 = vpop.f32.mrf.mxu0
        %v1054 = vadd.f32 %v921, %v1053
        %v1055 = vpop.f32.mrf.mxu0
        %v1056 = vadd.f32 %v923, %v1055
        %1057 = vmatprep.mubr.f32.mxu0 0.0
        %v1058 = vand.u32 %v206, 4294901760
        %1059 = vmatmul.mubr.f32.gmra.mxu0 %v1058
        %v1060 = vpop.f32.mrf.mxu0
        %v1061 = vadd.f32 %v932, %v1060
        %v1062 = vpop.f32.mrf.mxu0
        %v1063 = vadd.f32 %v934, %v1062
        %1064 = vdwg.mxu0
        %1065 = vmatprep.subr.mxu0 0.0
        %1066 = vmatpush1.msra.mxu0 0.0
        %1067 = vmatprep.subr.mxu0 0.0
        %1068 = vmatpush1.msra.mxu0 0.0
        %1069 = vmatprep.subr.mxu0 0.0
        %1070 = vmatpush1.msra.mxu0 0.0
        %1071 = vmatprep.subr.mxu0 0.0
        %1072 = vmatpush1.msra.mxu0 0.0
        %1073 = vmatprep.subr.mxu0 0.0
        %1074 = vmatpush1.msra.mxu0 0.0
        %1075 = vmatprep.subr.mxu0 0.0
        %1076 = vmatpush1.msra.mxu0 0.0
        %1077 = vmatprep.subr.mxu0 0.0
        %1078 = vmatpush1.msra.mxu0 0.0
        %1079 = vmatprep.subr.mxu0 0.0
        %1080 = vmatpush1.msra.mxu0 0.0
        %1081 = vmatprep.subr.mxu0 0.0
        %1082 = vmatpush1.msra.mxu0 0.0
        %1083 = vmatprep.subr.mxu0 0.0
        %1084 = vmatpush1.msra.mxu0 0.0
        %1085 = vmatprep.subr.mxu0 0.0
        %1086 = vmatpush1.msra.mxu0 0.0
        %v1087 = vand.u32 %v219, 4294901760
        %v1088 = vsub.f32 %v219, %v1087
        %1089 = vmatprep.subr.mxu0 %v1088
        %v1090 = vand.u32 %v216, 4294901760
        %v1091 = vsub.f32 %v216, %v1090
        %1092 = vmatpush1.msra.mxu0 %v1091
        %v1093 = vand.u32 %v196, 4294901760
        %v1094 = vsub.f32 %v196, %v1093
        %1095 = vmatprep.subr.mxu0 %v1094
        %v1096 = vand.u32 %v195, 4294901760
        %v1097 = vsub.f32 %v195, %v1096
        %1098 = vmatpush1.msra.mxu0 %v1097
        %v1099 = vand.u32 %v192, 4294901760
        %v1100 = vsub.f32 %v192, %v1099
        %1101 = vmatprep.subr.mxu0 %v1100
        %v1102 = vand.u32 %v191, 4294901760
        %v1103 = vsub.f32 %v191, %v1102
        %1104 = vmatpush1.msra.mxu0 %v1103
        %v1105 = vand.u32 %v188, 4294901760
        %v1106 = vsub.f32 %v188, %v1105
        %1107 = vmatprep.subr.mxu0 %v1106
        %v1108 = vand.u32 %v187, 4294901760
        %v1109 = vsub.f32 %v187, %v1108
        %1110 = vmatpush1.msra.mxu0 %v1109
        %v1111 = vand.u32 %v184, 4294901760
        %v1112 = vsub.f32 %v184, %v1111
        %1113 = vmatprep.subr.mxu0 %v1112
        %v1114 = vand.u32 %v183, 4294901760
        %v1115 = vsub.f32 %v183, %v1114
        %1116 = vmatpush1.msra.mxu0 %v1115
        %1117 = vmatprep.subr.mxu0 0.0
        %1118 = vmatpush2.msra.mxu0 0.0
        %1119 = vmatprep.subr.mxu0 0.0
        %1120 = vmatpush2.msra.mxu0 0.0
        %1121 = vmatprep.subr.mxu0 0.0
        %1122 = vmatpush2.msra.mxu0 0.0
        %1123 = vmatprep.subr.mxu0 0.0
        %1124 = vmatpush2.msra.mxu0 0.0
        %1125 = vmatprep.subr.mxu0 0.0
        %1126 = vmatpush2.msra.mxu0 0.0
        %1127 = vmatprep.subr.mxu0 0.0
        %1128 = vmatpush2.msra.mxu0 0.0
        %1129 = vmatprep.subr.mxu0 0.0
        %1130 = vmatpush2.msra.mxu0 0.0
        %1131 = vmatprep.subr.mxu0 0.0
        %1132 = vmatpush2.msra.mxu0 0.0
        %1133 = vmatprep.subr.mxu0 0.0
        %1134 = vmatpush2.msra.mxu0 0.0
        %1135 = vmatprep.subr.mxu0 0.0
        %1136 = vmatpush2.msra.mxu0 0.0
        %1137 = vmatprep.subr.mxu0 0.0
        %1138 = vmatpush2.msra.mxu0 0.0
        %1139 = vmatprep.subr.mxu0 0.0
        %1140 = vmatpush2.msra.mxu0 0.0
        %1141 = vmatprep.subr.mxu0 0.0
        %1142 = vmatpush2.msra.mxu0 0.0
        %1143 = vmatprep.subr.mxu0 0.0
        %1144 = vmatpush2.msra.mxu0 0.0
        %1145 = vmatprep.subr.mxu0 0.0
        %1146 = vmatpush2.msra.mxu0 0.0
        %1147 = vmatprep.subr.mxu0 0.0
        %1148 = vmatpush2.msra.mxu0 0.0
        %1149 = vmatprep.mubr.f32.mxu0 0.0
        %v1150 = vand.u32 %v203, 4294901760
        %v1151 = vsub.f32 %v203, %v1150
        %1152 = vmatmul.mubr.f32.gmra.mxu0 %v1151
        %v1153 = vpop.f32.mrf.mxu0
        %v1154 = vadd.f32 %v1054, %v1153
        %v1155 = vpop.f32.mrf.mxu0
        %v1156 = vadd.f32 %v1056, %v1155
        %1157 = vmatprep.mubr.f32.mxu0 0.0
        %v1158 = vand.u32 %v206, 4294901760
        %v1159 = vsub.f32 %v206, %v1158
        %1160 = vmatmul.mubr.f32.gmra.mxu0 %v1159
        %v1161 = vpop.f32.mrf.mxu0
        %v1162 = vadd.f32 %v1061, %v1161
        %v1163 = vpop.f32.mrf.mxu0
        %v1164 = vadd.f32 %v1063, %v1163
        %1165 = vdwg.mxu0
        %1166 = vmatprep.subr.mxu0 0.0
        %1167 = vmatpush1.msra.mxu0 0.0
        %1168 = vmatprep.subr.mxu0 0.0
        %1169 = vmatpush1.msra.mxu0 0.0
        %1170 = vmatprep.subr.mxu0 0.0
        %1171 = vmatpush1.msra.mxu0 0.0
        %1172 = vmatprep.subr.mxu0 0.0
        %1173 = vmatpush1.msra.mxu0 0.0
        %1174 = vmatprep.subr.mxu0 0.0
        %1175 = vmatpush1.msra.mxu0 0.0
        %1176 = vmatprep.subr.mxu0 0.0
        %1177 = vmatpush1.msra.mxu0 0.0
        %1178 = vmatprep.subr.mxu0 0.0
        %1179 = vmatpush1.msra.mxu0 0.0
        %1180 = vmatprep.subr.mxu0 0.0
        %1181 = vmatpush1.msra.mxu0 0.0
        %1182 = vmatprep.subr.mxu0 0.0
        %1183 = vmatpush1.msra.mxu0 0.0
        %1184 = vmatprep.subr.mxu0 0.0
        %1185 = vmatpush1.msra.mxu0 0.0
        %1186 = vmatprep.subr.mxu0 0.0
        %1187 = vmatpush1.msra.mxu0 0.0
        %v1188 = vand.u32 %v219, 4294901760
        %1189 = vmatprep.subr.mxu0 %v1188
        %v1190 = vand.u32 %v216, 4294901760
        %1191 = vmatpush1.msra.mxu0 %v1190
        %v1192 = vand.u32 %v196, 4294901760
        %1193 = vmatprep.subr.mxu0 %v1192
        %v1194 = vand.u32 %v195, 4294901760
        %1195 = vmatpush1.msra.mxu0 %v1194
        %v1196 = vand.u32 %v192, 4294901760
        %1197 = vmatprep.subr.mxu0 %v1196
        %v1198 = vand.u32 %v191, 4294901760
        %1199 = vmatpush1.msra.mxu0 %v1198
        %v1200 = vand.u32 %v188, 4294901760
        %1201 = vmatprep.subr.mxu0 %v1200
        %v1202 = vand.u32 %v187, 4294901760
        %1203 = vmatpush1.msra.mxu0 %v1202
        %v1204 = vand.u32 %v184, 4294901760
        %1205 = vmatprep.subr.mxu0 %v1204
        %v1206 = vand.u32 %v183, 4294901760
        %1207 = vmatpush1.msra.mxu0 %v1206
        %1208 = vmatprep.subr.mxu0 0.0
        %1209 = vmatpush2.msra.mxu0 0.0
        %1210 = vmatprep.subr.mxu0 0.0
        %1211 = vmatpush2.msra.mxu0 0.0
        %1212 = vmatprep.subr.mxu0 0.0
        %1213 = vmatpush2.msra.mxu0 0.0
        %1214 = vmatprep.subr.mxu0 0.0
        %1215 = vmatpush2.msra.mxu0 0.0
        %1216 = vmatprep.subr.mxu0 0.0
        %1217 = vmatpush2.msra.mxu0 0.0
        %1218 = vmatprep.subr.mxu0 0.0
        %1219 = vmatpush2.msra.mxu0 0.0
        %1220 = vmatprep.subr.mxu0 0.0
        %1221 = vmatpush2.msra.mxu0 0.0
        %1222 = vmatprep.subr.mxu0 0.0
        %1223 = vmatpush2.msra.mxu0 0.0
        %1224 = vmatprep.subr.mxu0 0.0
        %1225 = vmatpush2.msra.mxu0 0.0
        %1226 = vmatprep.subr.mxu0 0.0
        %1227 = vmatpush2.msra.mxu0 0.0
        %1228 = vmatprep.subr.mxu0 0.0
        %1229 = vmatpush2.msra.mxu0 0.0
        %1230 = vmatprep.subr.mxu0 0.0
        %1231 = vmatpush2.msra.mxu0 0.0
        %1232 = vmatprep.subr.mxu0 0.0
        %1233 = vmatpush2.msra.mxu0 0.0
        %1234 = vmatprep.subr.mxu0 0.0
        %1235 = vmatpush2.msra.mxu0 0.0
        %1236 = vmatprep.subr.mxu0 0.0
        %1237 = vmatpush2.msra.mxu0 0.0
        %1238 = vmatprep.subr.mxu0 0.0
        %1239 = vmatpush2.msra.mxu0 0.0
        %1240 = vmatprep.mubr.f32.mxu0 0.0
        %v1241 = vand.u32 %v203, 4294901760
        %v1242 = vsub.f32 %v203, %v1241
        %v1243 = vand.u32 %v1242, 4294901760
        %1244 = vmatmul.mubr.f32.gmra.mxu0 %v1243
        %v1245 = vpop.f32.mrf.mxu0
        %v1246 = vadd.f32 %v1154, %v1245
        %v1247 = vpop.f32.mrf.mxu0
        %v1248 = vadd.f32 %v1156, %v1247
        %1249 = vmatprep.mubr.f32.mxu0 0.0
        %v1250 = vand.u32 %v206, 4294901760
        %v1251 = vsub.f32 %v206, %v1250
        %v1252 = vand.u32 %v1251, 4294901760
        %1253 = vmatmul.mubr.f32.gmra.mxu0 %v1252
        %v1254 = vpop.f32.mrf.mxu0
        %v1255 = vadd.f32 %v1162, %v1254
        %v1256 = vpop.f32.mrf.mxu0
        %v1257 = vadd.f32 %v1164, %v1256
        %1258 = vdwg.mxu0
        %1259 = vmatprep.subr.mxu0 0.0
        %1260 = vmatpush1.msra.mxu0 0.0
        %1261 = vmatprep.subr.mxu0 0.0
        %1262 = vmatpush1.msra.mxu0 0.0
        %1263 = vmatprep.subr.mxu0 0.0
        %1264 = vmatpush1.msra.mxu0 0.0
        %1265 = vmatprep.subr.mxu0 0.0
        %1266 = vmatpush1.msra.mxu0 0.0
        %1267 = vmatprep.subr.mxu0 0.0
        %1268 = vmatpush1.msra.mxu0 0.0
        %1269 = vmatprep.subr.mxu0 0.0
        %1270 = vmatpush1.msra.mxu0 0.0
        %1271 = vmatprep.subr.mxu0 0.0
        %1272 = vmatpush1.msra.mxu0 0.0
        %1273 = vmatprep.subr.mxu0 0.0
        %1274 = vmatpush1.msra.mxu0 0.0
        %1275 = vmatprep.subr.mxu0 0.0
        %1276 = vmatpush1.msra.mxu0 0.0
        %1277 = vmatprep.subr.mxu0 0.0
        %1278 = vmatpush1.msra.mxu0 0.0
        %1279 = vmatprep.subr.mxu0 0.0
        %1280 = vmatpush1.msra.mxu0 0.0
        %v1281 = vand.u32 %v219, 4294901760
        %v1282 = vsub.f32 %v219, %v1281
        %v1283 = vand.u32 %v1282, 4294901760
        %1284 = vmatprep.subr.mxu0 %v1283
        %v1285 = vand.u32 %v216, 4294901760
        %v1286 = vsub.f32 %v216, %v1285
        %v1287 = vand.u32 %v1286, 4294901760
        %1288 = vmatpush1.msra.mxu0 %v1287
        %v1289 = vand.u32 %v196, 4294901760
        %v1290 = vsub.f32 %v196, %v1289
        %v1291 = vand.u32 %v1290, 4294901760
        %1292 = vmatprep.subr.mxu0 %v1291
        %v1293 = vand.u32 %v195, 4294901760
        %v1294 = vsub.f32 %v195, %v1293
        %v1295 = vand.u32 %v1294, 4294901760
        %1296 = vmatpush1.msra.mxu0 %v1295
        %v1297 = vand.u32 %v192, 4294901760
        %v1298 = vsub.f32 %v192, %v1297
        %v1299 = vand.u32 %v1298, 4294901760
        %1300 = vmatprep.subr.mxu0 %v1299
        %v1301 = vand.u32 %v191, 4294901760
        %v1302 = vsub.f32 %v191, %v1301
        %v1303 = vand.u32 %v1302, 4294901760
        %1304 = vmatpush1.msra.mxu0 %v1303
        %v1305 = vand.u32 %v188, 4294901760
        %v1306 = vsub.f32 %v188, %v1305
        %v1307 = vand.u32 %v1306, 4294901760
        %1308 = vmatprep.subr.mxu0 %v1307
        %v1309 = vand.u32 %v187, 4294901760
        %v1310 = vsub.f32 %v187, %v1309
        %v1311 = vand.u32 %v1310, 4294901760
        %1312 = vmatpush1.msra.mxu0 %v1311
        %v1313 = vand.u32 %v184, 4294901760
        %v1314 = vsub.f32 %v184, %v1313
        %v1315 = vand.u32 %v1314, 4294901760
        %1316 = vmatprep.subr.mxu0 %v1315
        %v1317 = vand.u32 %v183, 4294901760
        %v1318 = vsub.f32 %v183, %v1317
        %v1319 = vand.u32 %v1318, 4294901760
        %1320 = vmatpush1.msra.mxu0 %v1319
        %1321 = vmatprep.subr.mxu0 0.0
        %1322 = vmatpush2.msra.mxu0 0.0
        %1323 = vmatprep.subr.mxu0 0.0
        %1324 = vmatpush2.msra.mxu0 0.0
        %1325 = vmatprep.subr.mxu0 0.0
        %1326 = vmatpush2.msra.mxu0 0.0
        %1327 = vmatprep.subr.mxu0 0.0
        %1328 = vmatpush2.msra.mxu0 0.0
        %1329 = vmatprep.subr.mxu0 0.0
        %1330 = vmatpush2.msra.mxu0 0.0
        %1331 = vmatprep.subr.mxu0 0.0
        %1332 = vmatpush2.msra.mxu0 0.0
        %1333 = vmatprep.subr.mxu0 0.0
        %1334 = vmatpush2.msra.mxu0 0.0
        %1335 = vmatprep.subr.mxu0 0.0
        %1336 = vmatpush2.msra.mxu0 0.0
        %1337 = vmatprep.subr.mxu0 0.0
        %1338 = vmatpush2.msra.mxu0 0.0
        %1339 = vmatprep.subr.mxu0 0.0
        %1340 = vmatpush2.msra.mxu0 0.0
        %1341 = vmatprep.subr.mxu0 0.0
        %1342 = vmatpush2.msra.mxu0 0.0
        %1343 = vmatprep.subr.mxu0 0.0
        %1344 = vmatpush2.msra.mxu0 0.0
        %1345 = vmatprep.subr.mxu0 0.0
        %1346 = vmatpush2.msra.mxu0 0.0
        %1347 = vmatprep.subr.mxu0 0.0
        %1348 = vmatpush2.msra.mxu0 0.0
        %1349 = vmatprep.subr.mxu0 0.0
        %1350 = vmatpush2.msra.mxu0 0.0
        %1351 = vmatprep.subr.mxu0 0.0
        %1352 = vmatpush2.msra.mxu0 0.0
        %1353 = vmatprep.mubr.f32.mxu0 0.0
        %v1354 = vand.u32 %v203, 4294901760
        %1355 = vmatmul.mubr.f32.gmra.mxu0 %v1354
        %v1356 = vpop.f32.mrf.mxu0
        %v1357 = vadd.f32 %v1246, %v1356
        %v1358 = vpop.f32.mrf.mxu0
        %v1359 = vadd.f32 %v1248, %v1358
        %1360 = vmatprep.mubr.f32.mxu0 0.0
        %v1361 = vand.u32 %v206, 4294901760
        %1362 = vmatmul.mubr.f32.gmra.mxu0 %v1361
        %v1363 = vpop.f32.mrf.mxu0
        %v1364 = vadd.f32 %v1255, %v1363
        %v1365 = vpop.f32.mrf.mxu0
        %v1366 = vadd.f32 %v1257, %v1365
        %1367 = vdwg.mxu0
        %1368 = vmatprep.subr.mxu0 0.0
        %1369 = vmatpush1.msra.mxu0 0.0
        %1370 = vmatprep.subr.mxu0 0.0
        %1371 = vmatpush1.msra.mxu0 0.0
        %1372 = vmatprep.subr.mxu0 0.0
        %1373 = vmatpush1.msra.mxu0 0.0
        %1374 = vmatprep.subr.mxu0 0.0
        %1375 = vmatpush1.msra.mxu0 0.0
        %1376 = vmatprep.subr.mxu0 0.0
        %1377 = vmatpush1.msra.mxu0 0.0
        %1378 = vmatprep.subr.mxu0 0.0
        %1379 = vmatpush1.msra.mxu0 0.0
        %1380 = vmatprep.subr.mxu0 0.0
        %1381 = vmatpush1.msra.mxu0 0.0
        %1382 = vmatprep.subr.mxu0 0.0
        %1383 = vmatpush1.msra.mxu0 0.0
        %1384 = vmatprep.subr.mxu0 0.0
        %1385 = vmatpush1.msra.mxu0 0.0
        %1386 = vmatprep.subr.mxu0 0.0
        %1387 = vmatpush1.msra.mxu0 0.0
        %1388 = vmatprep.subr.mxu0 0.0
        %1389 = vmatpush1.msra.mxu0 0.0
        %v1390 = vand.u32 %v219, 4294901760
        %1391 = vmatprep.subr.mxu0 %v1390
        %v1392 = vand.u32 %v216, 4294901760
        %1393 = vmatpush1.msra.mxu0 %v1392
        %v1394 = vand.u32 %v196, 4294901760
        %1395 = vmatprep.subr.mxu0 %v1394
        %v1396 = vand.u32 %v195, 4294901760
        %1397 = vmatpush1.msra.mxu0 %v1396
        %v1398 = vand.u32 %v192, 4294901760
        %1399 = vmatprep.subr.mxu0 %v1398
        %v1400 = vand.u32 %v191, 4294901760
        %1401 = vmatpush1.msra.mxu0 %v1400
        %v1402 = vand.u32 %v188, 4294901760
        %1403 = vmatprep.subr.mxu0 %v1402
        %v1404 = vand.u32 %v187, 4294901760
        %1405 = vmatpush1.msra.mxu0 %v1404
        %v1406 = vand.u32 %v184, 4294901760
        %1407 = vmatprep.subr.mxu0 %v1406
        %v1408 = vand.u32 %v183, 4294901760
        %1409 = vmatpush1.msra.mxu0 %v1408
        %1410 = vmatprep.subr.mxu0 0.0
        %1411 = vmatpush2.msra.mxu0 0.0
        %1412 = vmatprep.subr.mxu0 0.0
        %1413 = vmatpush2.msra.mxu0 0.0
        %1414 = vmatprep.subr.mxu0 0.0
        %1415 = vmatpush2.msra.mxu0 0.0
        %1416 = vmatprep.subr.mxu0 0.0
        %1417 = vmatpush2.msra.mxu0 0.0
        %1418 = vmatprep.subr.mxu0 0.0
        %1419 = vmatpush2.msra.mxu0 0.0
        %1420 = vmatprep.subr.mxu0 0.0
        %1421 = vmatpush2.msra.mxu0 0.0
        %1422 = vmatprep.subr.mxu0 0.0
        %1423 = vmatpush2.msra.mxu0 0.0
        %1424 = vmatprep.subr.mxu0 0.0
        %1425 = vmatpush2.msra.mxu0 0.0
        %1426 = vmatprep.subr.mxu0 0.0
        %1427 = vmatpush2.msra.mxu0 0.0
        %1428 = vmatprep.subr.mxu0 0.0
        %1429 = vmatpush2.msra.mxu0 0.0
        %1430 = vmatprep.subr.mxu0 0.0
        %1431 = vmatpush2.msra.mxu0 0.0
        %1432 = vmatprep.subr.mxu0 0.0
        %1433 = vmatpush2.msra.mxu0 0.0
        %1434 = vmatprep.subr.mxu0 0.0
        %1435 = vmatpush2.msra.mxu0 0.0
        %1436 = vmatprep.subr.mxu0 0.0
        %1437 = vmatpush2.msra.mxu0 0.0
        %1438 = vmatprep.subr.mxu0 0.0
        %1439 = vmatpush2.msra.mxu0 0.0
        %1440 = vmatprep.subr.mxu0 0.0
        %1441 = vmatpush2.msra.mxu0 0.0
        %1442 = vmatprep.mubr.f32.mxu0 0.0
        %v1443 = vand.u32 %v203, 4294901760
        %1444 = vmatmul.mubr.f32.gmra.mxu0 %v1443
        %v1445 = vpop.f32.mrf.mxu0
        %v1446 = vadd.f32 %v1357, %v1445
        %v1447 = vpop.f32.mrf.mxu0
        %v1448 = vadd.f32 %v1359, %v1447
        %1449 = vmatprep.mubr.f32.mxu0 0.0
        %v1450 = vand.u32 %v206, 4294901760
        %1451 = vmatmul.mubr.f32.gmra.mxu0 %v1450
        %v1452 = vpop.f32.mrf.mxu0
        %v1453 = vadd.f32 %v1364, %v1452
        %v1454 = vpop.f32.mrf.mxu0
        %v1455 = vadd.f32 %v1366, %v1454
        %1456 = vdwg.mxu0
        %v1457 = vadd.f32 %v828, 0.5
        %v1458 = vadd.f32 %v830, 0.5
        %v1459 = vadd.f32 %v1446, 0.5
        %v1460 = vadd.f32 %v1448, 0.5
        %v1461 = vadd.f32 %v835, 0.5
        %v1462 = vadd.f32 %v837, 0.5
        %v1463 = vadd.f32 %v1453, 0.5
        %v1464 = vadd.f32 %v1455, 0.5
        %v1465 = vfloor.f32 %v1457
        %v1466 = vfloor.f32 %v1458
        %v1467 = vfloor.f32 %v1459
        %v1468 = vfloor.f32 %v1460
        %v1469 = vfloor.f32 %v1461
        %v1470 = vfloor.f32 %v1462
        %v1471 = vfloor.f32 %v1463
        %v1472 = vfloor.f32 %v1464
        %v1473 = vsub.f32 %v828, %v1465
        %v1474 = vsub.f32 %v830, %v1466
        %v1475 = vsub.f32 %v1446, %v1467
        %v1476 = vsub.f32 %v1448, %v1468
        %v1477 = vsub.f32 %v835, %v1469
        %v1478 = vsub.f32 %v837, %v1470
        %v1479 = vsub.f32 %v1453, %v1471
        %v1480 = vsub.f32 %v1455, %v1472
        %v1481 = vmul.f32 %v1473, %v1473
        %v1482 = vmul.f32 %v1474, %v1474
        %v1483 = vmul.f32 %v1475, %v1475
        %v1484 = vmul.f32 %v1476, %v1476
        %v1485 = vmul.f32 %v1477, %v1477
        %v1486 = vmul.f32 %v1478, %v1478
        %v1487 = vmul.f32 %v1479, %v1479
        %v1488 = vmul.f32 %v1480, %v1480
        %v1489 = vmul.f32 %v1481, -0.02580689
        %v1490 = vmul.f32 %v1482, -0.02580689
        %v1491 = vmul.f32 %v1483, -0.02580689
        %v1492 = vmul.f32 %v1484, -0.02580689
        %v1493 = vmul.f32 %v1485, -0.02580689
        %v1494 = vmul.f32 %v1486, -0.02580689
        %v1495 = vmul.f32 %v1487, -0.02580689
        %v1496 = vmul.f32 %v1488, -0.02580689
        %v1497 = vadd.f32 %v1489, 0.23533063
        %v1498 = vadd.f32 %v1490, 0.23533063
        %v1499 = vadd.f32 %v1491, 0.23533063
        %v1500 = vadd.f32 %v1492, 0.23533063
        %v1501 = vadd.f32 %v1493, 0.23533063
        %v1502 = vadd.f32 %v1494, 0.23533063
        %v1503 = vadd.f32 %v1495, 0.23533063
        %v1504 = vadd.f32 %v1496, 0.23533063
        %v1505 = vmul.f32 %v1497, %v1481
        %v1506 = vmul.f32 %v1498, %v1482
        %v1507 = vmul.f32 %v1499, %v1483
        %v1508 = vmul.f32 %v1500, %v1484
        %v1509 = vmul.f32 %v1501, %v1485
        %v1510 = vmul.f32 %v1502, %v1486
        %v1511 = vmul.f32 %v1503, %v1487
        %v1512 = vmul.f32 %v1504, %v1488
        %v1513 = vadd.f32 %v1505, -1.3352628
        %v1514 = vadd.f32 %v1506, -1.3352628
        %v1515 = vadd.f32 %v1507, -1.3352628
        %v1516 = vadd.f32 %v1508, -1.3352628
        %v1517 = vadd.f32 %v1509, -1.3352628
        %v1518 = vadd.f32 %v1510, -1.3352628
        %v1519 = vadd.f32 %v1511, -1.3352628
        %v1520 = vadd.f32 %v1512, -1.3352628
        %v1521 = vmul.f32 %v1513, %v1481
        %v1522 = vmul.f32 %v1514, %v1482
        %v1523 = vmul.f32 %v1515, %v1483
        %v1524 = vmul.f32 %v1516, %v1484
        %v1525 = vmul.f32 %v1517, %v1485
        %v1526 = vmul.f32 %v1518, %v1486
        %v1527 = vmul.f32 %v1519, %v1487
        %v1528 = vmul.f32 %v1520, %v1488
        %v1529 = vadd.f32 %v1521, 4.058712
        %v1530 = vadd.f32 %v1522, 4.058712
        %v1531 = vadd.f32 %v1523, 4.058712
        %v1532 = vadd.f32 %v1524, 4.058712
        %v1533 = vadd.f32 %v1525, 4.058712
        %v1534 = vadd.f32 %v1526, 4.058712
        %v1535 = vadd.f32 %v1527, 4.058712
        %v1536 = vadd.f32 %v1528, 4.058712
        %v1537 = vmul.f32 %v1529, %v1481
        %v1538 = vmul.f32 %v1530, %v1482
        %v1539 = vmul.f32 %v1531, %v1483
        %v1540 = vmul.f32 %v1532, %v1484
        %v1541 = vmul.f32 %v1533, %v1485
        %v1542 = vmul.f32 %v1534, %v1486
        %v1543 = vmul.f32 %v1535, %v1487
        %v1544 = vmul.f32 %v1536, %v1488
        %v1545 = vadd.f32 %v1537, -4.934802
        %v1546 = vadd.f32 %v1538, -4.934802
        %v1547 = vadd.f32 %v1539, -4.934802
        %v1548 = vadd.f32 %v1540, -4.934802
        %v1549 = vadd.f32 %v1541, -4.934802
        %v1550 = vadd.f32 %v1542, -4.934802
        %v1551 = vadd.f32 %v1543, -4.934802
        %v1552 = vadd.f32 %v1544, -4.934802
        %v1553 = vmul.f32 %v1545, %v1481
        %v1554 = vmul.f32 %v1546, %v1482
        %v1555 = vmul.f32 %v1547, %v1483
        %v1556 = vmul.f32 %v1548, %v1484
        %v1557 = vmul.f32 %v1549, %v1485
        %v1558 = vmul.f32 %v1550, %v1486
        %v1559 = vmul.f32 %v1551, %v1487
        %v1560 = vmul.f32 %v1552, %v1488
        %v1561 = vadd.f32 %v1553, 1.0
        %v1562 = vadd.f32 %v1554, 1.0
        %v1563 = vadd.f32 %v1555, 1.0
        %v1564 = vadd.f32 %v1556, 1.0
        %v1565 = vadd.f32 %v1557, 1.0
        %v1566 = vadd.f32 %v1558, 1.0
        %v1567 = vadd.f32 %v1559, 1.0
        %v1568 = vadd.f32 %v1560, 1.0
        %v1569 = vcvt.f32.s32.to.zero.pseudo %v1465
        %v1570 = vcvt.f32.s32.to.zero.pseudo %v1466
        %v1571 = vcvt.f32.s32.to.zero.pseudo %v1467
        %v1572 = vcvt.f32.s32.to.zero.pseudo %v1468
        %v1573 = vcvt.f32.s32.to.zero.pseudo %v1469
        %v1574 = vcvt.f32.s32.to.zero.pseudo %v1470
        %v1575 = vcvt.f32.s32.to.zero.pseudo %v1471
        %v1576 = vcvt.f32.s32.to.zero.pseudo %v1472
        %v1577 = vand.u32 %v1569, 1
        %v1578 = vand.u32 %v1570, 1
        %v1579 = vand.u32 %v1571, 1
        %v1580 = vand.u32 %v1572, 1
        %v1581 = vand.u32 %v1573, 1
        %v1582 = vand.u32 %v1574, 1
        %v1583 = vand.u32 %v1575, 1
        %v1584 = vand.u32 %v1576, 1
        %vm1585 = vcmp.eq.s32.totalorder %v1577, 0
        %vm1586 = vcmp.eq.s32.totalorder %v1578, 0
        %vm1587 = vcmp.eq.s32.totalorder %v1579, 0
        %vm1588 = vcmp.eq.s32.totalorder %v1580, 0
        %vm1589 = vcmp.eq.s32.totalorder %v1581, 0
        %vm1590 = vcmp.eq.s32.totalorder %v1582, 0
        %vm1591 = vcmp.eq.s32.totalorder %v1583, 0
        %vm1592 = vcmp.eq.s32.totalorder %v1584, 0
        %v1593 = vsub.f32 0.0, %v1561
        %v1594 = vsub.f32 0.0, %v1562
        %v1595 = vsub.f32 0.0, %v1563
        %v1596 = vsub.f32 0.0, %v1564
        %v1597 = vsub.f32 0.0, %v1565
        %v1598 = vsub.f32 0.0, %v1566
        %v1599 = vsub.f32 0.0, %v1567
        %v1600 = vsub.f32 0.0, %v1568
        %v1601 = vsel %vm1585, %v1561, %v1593
        %v1602 = vsel %vm1586, %v1562, %v1594
        %v1603 = vsel %vm1587, %v1563, %v1595
        %v1604 = vsel %vm1588, %v1564, %v1596
        %v1605 = vsel %vm1589, %v1565, %v1597
        %v1606 = vsel %vm1590, %v1566, %v1598
        %v1607 = vsel %vm1591, %v1567, %v1599
        %v1608 = vsel %vm1592, %v1568, %v1600
        %1609 = vst [vmem:[%s176] sm:$0xff] %v1601
        %1610 = vst [vmem:[%s176 + $0x8] sm:$0xff] %v1602
        %1611 = vst [vmem:[%s176 + $0x10] sm:$0xff] %v1603
        %1612 = vst [vmem:[%s176 + $0x18] sm:$0xff] %v1604
        %1613 = vst [vmem:[%s176 + $0x20] sm:$0xff] %v1605
        %1614 = vst [vmem:[%s176 + $0x28] sm:$0xff] %v1606
        %1615 = vst [vmem:[%s176 + $0x30] sm:$0xff] %v1607
        %1616 = vst [vmem:[%s176 + $0x38] sm:$0xff] %v1608
        %s1617 = sand.u32 %s75, 1
        %s1618 = scalar_lea.sflag [#allocation4], %s1617
        %s1619 = sand.u32 %s75, 1
        %s1620 = smul.addr %s1619, 64
        %s1621 = scalar_lea.vmem [#allocation7], %s1620
        // Predicated region
        $region37: #{tpu_custom_call.1} parent=27 // pred_check
          %p1622 = pneg %p85
        $region38: #{tpu_custom_call.1} parent=27 // pred_check_branch
          %1624 = sbr.rel (%p1622) target = $region40
        $region39: #{tpu_custom_call.1} parent=27 // pred_region
          %s1625 = smul.u32 2, %s20
          %s1627 = ssub.s32 1024, 1024
          %1628 = vsyncadd %s1618, %s1627
          %s1629 = smul.addr %s1625, 4
          %s1630 = smul.addr %s1629, 128
          %s1631 = scalar_lea.hbm %s2, %s1630
          %s1632 = sshll.u32 %s1621, 4
          %s1633 = int_to_ptr.vmem [resolvable:$true] %s1632
          %1638 = dma.vmem_to_hbm [thread:$0]  %s1633, 1024, %s1631, %s1618, 512, 512, 32
        $region40: #{tpu_custom_call.1} parent=27 // pred_fallthru
          _
      $region28: #{tpu_custom_call.1} parent=5 // pred_fallthru
        _
      %p1639 = scmp.le.s32.totalorder 2, %s15
      // Predicated region
      $region41: #{tpu_custom_call.1} parent=5 // pred_check
        %p1640 = pneg %p1639
      $region42: #{tpu_custom_call.1} parent=5 // pred_check_branch
        %1642 = sbr.rel (%p1640) target = $region44
      $region43: #{tpu_custom_call.1} parent=5 // pred_region
        %s1643 = ssub.s32 %s15, 2
        // Predicated region
        $region45: #{tpu_custom_call.1} parent=43 // pred_check
          %p1644 = pneg %p91
        $region46: #{tpu_custom_call.1} parent=43 // pred_check_branch
          %1646 = sbr.rel (%p1644) target = $region48
        $region47: #{tpu_custom_call.1} parent=43 // pred_region
          %s1647 = sand.u32 %s76, 1
          %s1648 = scalar_lea.sflag [#allocation4], %s1647
          %s1649 = sand.u32 %s76, 1
          %s1650 = smul.addr %s1649, 64
          %s1651 = scalar_lea.vmem [#allocation7], %s1650
          %1652 = dma.done %s1648, 1024
        $region48: #{tpu_custom_call.1} parent=43 // pred_fallthru
          _
      $region44: #{tpu_custom_call.1} parent=5 // pred_fallthru
        _
    $region6: #{tpu_custom_call.1} parent=1 // loop_footer
      %s19 = sadd.s32 1, %s15
    $region7: #{tpu_custom_call.1} parent=1 // loop_footer_branch
      %14 = sbr.rel target = $region3
    $region8: #{tpu_custom_call.1} parent=1 // loop_exit
      _
    %1653 = vsyncpa [#allocation3], 1
    %s1654 = scalar_lea.sflag [#allocation3], 1
    %1655 = vsyncpa %s1654, 1
    %1656 = vsyncpa [#allocation6], 1
    %s1657 = scalar_lea.sflag [#allocation6], 1
    %1658 = vsyncpa %s1657, 1
    %1659 = vsyncpa [#allocation4], 1
    %s1660 = scalar_lea.sflag [#allocation4], 1
    %1661 = vsyncpa %s1660, 1

</llo_original>
